<compile_context>
chip_gen: v7x
topology: tpu7x:2x2x1
jax: 0.10.0
libtpu: 0.0.40
codegen_flags: <defaults>
</compile_context>

<pallas_src>
import functools

import jax
import jax.numpy as jnp
from jax.experimental import pallas as pl
from jax.experimental.pallas import tpu as pltpu


def _tagspace_kernel(x_ref, wconv_ref, bconv_ref, wdec_ref, bdec_ref, o_ref,
                     *, window_size, l_out, pool_size, mxu_dtype):
    # x_ref:     (B_t, L_pad, E)  gathered + zero-padded embeddings (pre-renorm, f32)
    # wconv_ref: (K*E, H)         conv1d weight, im2col layout (k-major rows), mxu_dtype
    # bconv_ref: (1, H)           conv1d bias, f32
    # wdec_ref:  (H, E)           decoder weight transposed, mxu_dtype
    # bdec_ref:  (1, E)           decoder bias, f32
    # o_ref:     (B_t, E)         output embeddings for this batch tile
    x = x_ref[...].astype(jnp.float32)                     # (B_t, L_pad, E)
    b_t, _, e = x.shape
    h = wconv_ref.shape[1]

    # nn.Embedding(max_norm=1) renorm (functional form), squared-norm + rsqrt
    # (single EUP op; zero pad rows have norm 0 -> scale 1 -> stay zero).
    norm_sq = jnp.sum(x * x, axis=-1, keepdims=True)
    x = x * jnp.where(norm_sq > 1.0, jax.lax.rsqrt(norm_sq), 1.0)

    # im2col: concat the K shifted windows along the channel axis -> a single
    # MXU matmul with a K*E contraction.
    patches = jnp.concatenate(
        [x[:, k:k + l_out, :] for k in range(window_size)], axis=-1)
    patches = patches.reshape(b_t * l_out, window_size * e)  # (B_t*l_out, K*E)

    conv_lin = jnp.dot(patches.astype(mxu_dtype), wconv_ref[...],
                       preferred_element_type=jnp.float32)   # (B_t*l_out, H) f32
    conv_lin = conv_lin.reshape(b_t, l_out, h)

    # MaxPool1d(kernel_size=max_seq_length) over the first pool_size positions,
    # hoisted ahead of the bias add + first tanh (tanh is monotone, bias is
    # position-independent):  max(tanh(x+b)) == tanh(max(x)+b).
    pooled_lin = jnp.max(conv_lin[:, :pool_size, :], axis=1) + bconv_ref[...]  # (B_t, H)
    pooled = jnp.tanh(jnp.tanh(pooled_lin))                                    # (B_t, H)

    # Batched decoder: (B_t, H) @ (H, E) + bias.
    out = jnp.dot(pooled.astype(mxu_dtype), wdec_ref[...],
                  preferred_element_type=jnp.float32) + bdec_ref[...]
    o_ref[...] = out.astype(o_ref.dtype)


def prepare_tagspace_params(params, *, mxu_dtype=jnp.bfloat16):
    """One-time layout prep (hoisted out of the forward path).

    mxu_dtype: dtype of the matmul operands (bf16 is ~4-5x faster on the
    v6e/v7x MXU and halves weight DMA/VMEM; pass jnp.float32 for strict
    PyTorch parity).
    """
    h, e, k = params["conv_w"].shape
    return {
        "embed": params["embed"],                                       # (V, E)
        # (H, E, K) -> (K, E, H) -> (K*E, H): row index k*E + e <-> w[h, e, k].
        "conv_w_im2col": jnp.transpose(params["conv_w"], (2, 1, 0))
                            .reshape(k * e, h).astype(mxu_dtype),
        "conv_b": params["conv_b"].reshape(1, h).astype(jnp.float32),
        "dec_w_t": params["dec_w"].T.astype(mxu_dtype),                 # (H, E)
        "dec_b": params["dec_b"].reshape(1, e).astype(jnp.float32),
        "window_size": k,
        "mxu_dtype": mxu_dtype,
    }


def tagspace_forward(input_ids, prep, *, max_seq_length, padding=1,
                     batch_tile=256):
    # --- glue: embedding gather (single XLA gather) + zero-pad for the conv ---
    # TODO(synk): fuse this gather/pad into the kernel (scalar-prefetch ids +
    # per-tile row DMAs from HBM) to drop one (B, L_pad, E) HBM round trip.
    emb = jnp.take(prep["embed"], input_ids, axis=0).astype(jnp.float32)  # (B, L, E)
    x = jnp.pad(emb, ((0, 0), (padding, padding), (0, 0)))                # (B, L_pad, E)
    B, L_pad, E = x.shape

    K = prep["window_size"]
    KE, H = prep["conv_w_im2col"].shape
    l_out = L_pad - K + 1

    # Batch tiling.  The output block is (B_t, E), so B_t must be a multiple
    # of 8 (sublane) unless it covers the whole (padded) batch.  Padded rows
    # are zero (renorm-safe) and sliced off at the end.
    # NOTE: keep >= 2 grid blocks on v7x (2 TCs share the "parallel" axis);
    # on single-TC v5e/v6e prefer the fewest blocks that fit VMEM.
    B_t = min(batch_tile, B)
    if B_t < B:
        B_t = max(8, (B_t // 8) * 8)     # sublane-aligned partial tiles
    n_blocks = pl.cdiv(B, B_t)
    B_pad = n_blocks * B_t
    if B_pad != B:
        x = jnp.pad(x, ((0, B_pad - B), (0, 0), (0, 0)))

    kernel = functools.partial(_tagspace_kernel, window_size=K, l_out=l_out,
                               pool_size=max_seq_length,
                               mxu_dtype=prep["mxu_dtype"])

    w_bytes = (prep["conv_w_im2col"].size * prep["conv_w_im2col"].dtype.itemsize
               + prep["dec_w_t"].size * prep["dec_w_t"].dtype.itemsize
               + (H + E) * 4)
    cost = pl.CostEstimate(
        flops=int(2 * B_pad * l_out * KE * H + 2 * B_pad * H * E),
        transcendentals=int(B_pad * (2 * H + L_pad)),   # 2 tanh/(row,H) + rsqrt/row
        bytes_accessed=int(x.size * 4 + B_pad * E * 4 + n_blocks * w_bytes),
    )

    out = pl.pallas_call(
        kernel,
        out_shape=jax.ShapeDtypeStruct((B_pad, E), jnp.float32),
        grid_spec=pltpu.PrefetchScalarGridSpec(
            num_scalar_prefetch=0,
            grid=(n_blocks,),
            in_specs=[
                pl.BlockSpec((B_t, L_pad, E), lambda b: (b, 0, 0)),
                pl.BlockSpec((KE, H), lambda b: (0, 0)),
                pl.BlockSpec((1, H), lambda b: (0, 0)),
                pl.BlockSpec((H, E), lambda b: (0, 0)),
                pl.BlockSpec((1, E), lambda b: (0, 0)),
            ],
            out_specs=pl.BlockSpec((B_t, E), lambda b: (b, 0)),
        ),
        compiler_params=pltpu.CompilerParams(
            dimension_semantics=("parallel",)),
        cost_estimate=cost,
    )(x, prep["conv_w_im2col"], prep["conv_b"], prep["dec_w_t"], prep["dec_b"])
    return out[:B]


def tagspace_reference(input_ids, params, *, max_seq_length, padding=1):
    """Pure-JAX reference mirroring the PyTorch forward (NCL conv)."""
    emb = jnp.take(params["embed"], input_ids, axis=0)
    norm = jnp.sqrt(jnp.sum(emb * emb, axis=-1, keepdims=True))
    emb = emb * jnp.where(norm > 1.0, 1.0 / (norm + 1e-7), 1.0)
    x = jnp.transpose(emb, (0, 2, 1))                              # (B, E, L)
    conv = jax.lax.conv_general_dilated(
        x, params["conv_w"], window_strides=(1,),
        padding=[(padding, padding)],
        dimension_numbers=("NCH", "OIH", "NCH"))
    conv = jnp.tanh(conv + params["conv_b"][None, :, None])
    pooled = jnp.tanh(jnp.max(conv[:, :, :max_seq_length], axis=-1))
    return pooled @ params["dec_w"].T + params["dec_b"]


if __name__ == "__main__":
    # Small shapes consistent with the module.  The module only works when the
    # conv output length covers exactly one maxpool window, so the sequence
    # length is max_seq_length + window_size - 1 - 2*padding.
    B = 64           # batch_size
    E = 32           # embedding_dim
    V = 100          # vocab_size
    M = 8            # max_seq_length (maxpool kernel size)
    K = 5            # window_size
    H = 128          # hidden_size
    PAD = 1
    L = M + K - 1 - 2 * PAD   # = 10, so conv output length == M

    key = jax.random.PRNGKey(0)
    k_emb, k_cw, k_cb, k_dw, k_db, k_in = jax.random.split(key, 6)

    params = {
        "embed":  jax.random.normal(k_emb, (V, E), jnp.float32) * 0.2,
        "conv_w": jax.random.normal(k_cw, (H, E, K), jnp.float32) * 0.05,
        "conv_b": jax.random.normal(k_cb, (H,), jnp.float32) * 0.05,
        "dec_w":  jax.random.normal(k_dw, (E, H), jnp.float32) * 0.05,
        "dec_b":  jax.random.normal(k_db, (E,), jnp.float32) * 0.05,
    }
    input_ids = jax.random.randint(k_in, (B, L), 0, V, dtype=jnp.int32)

    ref = jax.block_until_ready(
        tagspace_reference(input_ids, params, max_seq_length=M, padding=PAD))

    # f32 MXU path: strict parity with the PyTorch math.
    prep_f32 = prepare_tagspace_params(params, mxu_dtype=jnp.float32)
    out_f32 = jax.block_until_ready(
        tagspace_forward(input_ids, prep_f32, max_seq_length=M, padding=PAD,
                         batch_tile=32))   # 2 "parallel" grid blocks
    assert out_f32.shape == (B, E)
    assert jnp.allclose(out_f32, ref, atol=1e-4, rtol=1e-4), (
        f"f32 path max abs diff {jnp.max(jnp.abs(out_f32 - ref))}")

    # bf16-MXU path (default prep): faster on v6e/v7x, looser tolerance.
    prep_bf16 = prepare_tagspace_params(params)
    out_bf16 = jax.block_until_ready(
        tagspace_forward(input_ids, prep_bf16, max_seq_length=M, padding=PAD,
                         batch_tile=32))
    assert out_bf16.shape == (B, E)
    assert jnp.allclose(out_bf16, ref, atol=2e-2, rtol=2e-2), (
        f"bf16 path max abs diff {jnp.max(jnp.abs(out_bf16 - ref))}")

    print("KERNEL_OK")
</pallas_src>

<mosaic_0001>
module attributes {stable_mosaic.version = 11 : i64} {
  func.func @_tagspace_kernel(%arg0: i32, %arg1: memref<32x12x32xf32, #tpu.memory_space<vmem>>, %arg2: memref<160x128xf32, #tpu.memory_space<vmem>>, %arg3: memref<1x128xf32, #tpu.memory_space<vmem>>, %arg4: memref<128x32xf32, #tpu.memory_space<vmem>>, %arg5: memref<1x32xf32, #tpu.memory_space<vmem>>, %arg6: memref<32x32xf32, #tpu.memory_space<vmem>>) attributes {dimension_semantics = [#tpu.dimension_semantics<parallel>], iteration_bounds = array<i64: 2>, scalar_prefetch = 0 : i64, scratch_operands = 0 : i64, tpu.core_type = #tpu.core_type<tc>, window_params = [{transform_indices = @transform_0, window_bounds = array<i64: 32, 12, 32>}, {pipeline_mode = #tpu.pipeline_mode<synchronous>, transform_indices = @transform_1, window_bounds = array<i64: 160, 128>}, {pipeline_mode = #tpu.pipeline_mode<synchronous>, transform_indices = @transform_2, window_bounds = array<i64: 1, 128>}, {pipeline_mode = #tpu.pipeline_mode<synchronous>, transform_indices = @transform_3, window_bounds = array<i64: 128, 32>}, {pipeline_mode = #tpu.pipeline_mode<synchronous>, transform_indices = @transform_4, window_bounds = array<i64: 1, 32>}, {transform_indices = @transform_5, window_bounds = array<i64: 32, 32>}]} {
    %c0 = arith.constant 0 : index
    %c0_0 = arith.constant 0 : index
    %c0_1 = arith.constant 0 : index
    %0 = vector.load %arg1[%c0, %c0_0, %c0_1] : memref<32x12x32xf32, #tpu.memory_space<vmem>>, vector<32x12x32xf32>
    %1 = arith.mulf %0, %0 : vector<32x12x32xf32>
    %cst = arith.constant dense<0.000000e+00> : vector<32x12xf32>
    %2 = vector.multi_reduction <add>, %1, %cst [2] : vector<32x12x32xf32> to vector<32x12xf32>
    %3 = vector.shape_cast %2 : vector<32x12xf32> to vector<32x12x1xf32>
    %cst_2 = arith.constant 1.000000e+00 : f32
    %4 = vector.broadcast %cst_2 : f32 to vector<32x12x1xf32>
    %5 = arith.cmpf ogt, %3, %4 : vector<32x12x1xf32>
    %6 = math.rsqrt %3 : vector<32x12x1xf32>
    %cst_3 = arith.constant 1.000000e+00 : f32
    %7 = vector.broadcast %cst_3 : f32 to vector<32x12x1xf32>
    %8 = arith.select %5, %6, %7 : vector<32x12x1xi1>, vector<32x12x1xf32>
    %9 = vector.broadcast %8 : vector<32x12x1xf32> to vector<32x12x32xf32>
    %10 = arith.mulf %0, %9 : vector<32x12x32xf32>
    %11 = vector.extract_strided_slice %10 {offsets = [0, 0, 0], sizes = [32, 8, 32], strides = [1, 1, 1]} : vector<32x12x32xf32> to vector<32x8x32xf32>
    %12 = vector.extract_strided_slice %10 {offsets = [0, 1, 0], sizes = [32, 8, 32], strides = [1, 1, 1]} : vector<32x12x32xf32> to vector<32x8x32xf32>
    %13 = vector.extract_strided_slice %10 {offsets = [0, 2, 0], sizes = [32, 8, 32], strides = [1, 1, 1]} : vector<32x12x32xf32> to vector<32x8x32xf32>
    %14 = vector.extract_strided_slice %10 {offsets = [0, 3, 0], sizes = [32, 8, 32], strides = [1, 1, 1]} : vector<32x12x32xf32> to vector<32x8x32xf32>
    %15 = vector.extract_strided_slice %10 {offsets = [0, 4, 0], sizes = [32, 8, 32], strides = [1, 1, 1]} : vector<32x12x32xf32> to vector<32x8x32xf32>
    %16 = tpu.concatenate %11, %12, %13, %14, %15 in 2 : vector<32x8x32xf32>, vector<32x8x32xf32>, vector<32x8x32xf32>, vector<32x8x32xf32>, vector<32x8x32xf32> -> vector<32x8x160xf32>
    %17 = vector.shape_cast %16 : vector<32x8x160xf32> to vector<256x160xf32>
    %c0_4 = arith.constant 0 : index
    %c0_5 = arith.constant 0 : index
    %18 = vector.load %arg2[%c0_4, %c0_5] : memref<160x128xf32, #tpu.memory_space<vmem>>, vector<160x128xf32>
    %cst_6 = arith.constant dense<0.000000e+00> : vector<256x128xf32>
    %19 = tpu.matmul %17, %18, %cst_6 {dimension_numbers = #tpu.dot_dimension_numbers<[1], [0], [0], [1], [0, 0, 1, 1], [], []>} : vector<256x160xf32>, vector<160x128xf32>, vector<256x128xf32> -> vector<256x128xf32>
    %20 = vector.shape_cast %19 : vector<256x128xf32> to vector<32x8x128xf32>
    %cst_7 = arith.constant dense<0xFF800000> : vector<32x128xf32>
    %21 = vector.multi_reduction <maximumf>, %20, %cst_7 [1] : vector<32x8x128xf32> to vector<32x128xf32>
    %c0_8 = arith.constant 0 : index
    %c0_9 = arith.constant 0 : index
    %22 = vector.load %arg3[%c0_8, %c0_9] : memref<1x128xf32, #tpu.memory_space<vmem>>, vector<1x128xf32>
    %23 = vector.broadcast %22 : vector<1x128xf32> to vector<32x128xf32>
    %24 = arith.addf %21, %23 : vector<32x128xf32>
    %25 = math.tanh %24 : vector<32x128xf32>
    %26 = math.tanh %25 : vector<32x128xf32>
    %c0_10 = arith.constant 0 : index
    %c0_11 = arith.constant 0 : index
    %27 = vector.load %arg4[%c0_10, %c0_11] : memref<128x32xf32, #tpu.memory_space<vmem>>, vector<128x32xf32>
    %cst_12 = arith.constant dense<0.000000e+00> : vector<32x32xf32>
    %28 = tpu.matmul %26, %27, %cst_12 {dimension_numbers = #tpu.dot_dimension_numbers<[1], [0], [0], [1], [0, 0, 1, 1], [], []>} : vector<32x128xf32>, vector<128x32xf32>, vector<32x32xf32> -> vector<32x32xf32>
    %c0_13 = arith.constant 0 : index
    %c0_14 = arith.constant 0 : index
    %29 = vector.load %arg5[%c0_13, %c0_14] : memref<1x32xf32, #tpu.memory_space<vmem>>, vector<1x32xf32>
    %30 = vector.broadcast %29 : vector<1x32xf32> to vector<32x32xf32>
    %31 = arith.addf %28, %30 : vector<32x32xf32>
    %c0_15 = arith.constant 0 : index
    %c0_16 = arith.constant 0 : index
    %32 = vector.load %arg6[%c0_15, %c0_16] : memref<32x32xf32, #tpu.memory_space<vmem>>, vector<32x32xf32>
    tpu.vector_store %arg6[%c0_15, %c0_16], %31 {strides = array<i32>} : memref<32x32xf32, #tpu.memory_space<vmem>>, vector<32x32xf32>,
    return
  }
  func.func @transform_0(%arg0: i32) -> (i32, i32, i32) {
    %c0_i32 = arith.constant 0 : i32
    %c0_i32_0 = arith.constant 0 : i32
    %c0_i32_1 = arith.constant 0 : i32
    return %arg0, %c0_i32, %c0_i32_0 : i32, i32, i32
  }
  func.func @transform_1(%arg0: i32) -> (i32, i32) {
    %c0_i32 = arith.constant 0 : i32
    %c0_i32_0 = arith.constant 0 : i32
    %c0_i32_1 = arith.constant 0 : i32
    return %c0_i32, %c0_i32_0 : i32, i32
  }
  func.func @transform_2(%arg0: i32) -> (i32, i32) {
    %c0_i32 = arith.constant 0 : i32
    %c0_i32_0 = arith.constant 0 : i32
    %c0_i32_1 = arith.constant 0 : i32
    return %c0_i32, %c0_i32_0 : i32, i32
  }
  func.func @transform_3(%arg0: i32) -> (i32, i32) {
    %c0_i32 = arith.constant 0 : i32
    %c0_i32_0 = arith.constant 0 : i32
    %c0_i32_1 = arith.constant 0 : i32
    return %c0_i32, %c0_i32_0 : i32, i32
  }
  func.func @transform_4(%arg0: i32) -> (i32, i32) {
    %c0_i32 = arith.constant 0 : i32
    %c0_i32_0 = arith.constant 0 : i32
    %c0_i32_1 = arith.constant 0 : i32
    return %c0_i32, %c0_i32_0 : i32, i32
  }
  func.func @transform_5(%arg0: i32) -> (i32, i32) {
    %c0_i32 = arith.constant 0 : i32
    %c0_i32_0 = arith.constant 0 : i32
    return %arg0, %c0_i32 : i32, i32
  }
}

</mosaic_0001>

<llo_original>
// kernel: tpu_custom_call.1
$region0: #{tpu_custom_call.1}
  #allocation0 [shape = 'u32[]', space=smem, size = 0x4, offset = 0x4, fixed_abs, tag = 'smem constant byte address 0x4 - core index']
  #allocation1 [shape = 'u32[144,128]{1,0:T(1,128)}', space=vmem, size = 0x12000, scoped, tag = 'internal scratch']
  %s0 = inlined_call_operand.vmem [shape: f32[64,12,32], index: 0, kind: input, shape index: {}]
  %s1 = inlined_call_operand.vmem [shape: f32[160,128], index: 1, kind: input, shape index: {}]
  %s2 = inlined_call_operand.vmem [shape: f32[1,128], index: 2, kind: input, shape index: {}]
  %s3 = inlined_call_operand.vmem [shape: f32[128,32], index: 3, kind: input, shape index: {}]
  %s4 = inlined_call_operand.vmem [shape: f32[1,32], index: 4, kind: input, shape index: {}]
  %s5 = inlined_call_operand.vmem [shape: f32[64,32], index: 5, kind: output, shape index: {}]
  %s6 = sld [smem:[#allocation0]]
  $region53: #{tpu_custom_call.1} parent=0
    _
  %s8 = ssub.s32 1, %s6
  %s9 = scalar_select 0, %s8, %s6
  loop: start=0, step=1, limit=4
  $region2: #{tpu_custom_call.1} parent=0 // loop_pre_header
    _
  $region3: #{tpu_custom_call.1} parent=0 // loop_header
    %s11 = sphi 0, %s15
    %p12 = scmp.ge.s32.totalorder %s11, 4
    %s21 = sphi 0, %s23
    %s24 = sphi 0, %s21
    %s25 = sphi 0, %s24
    %s41 = sphi 0, %s25
    %s45 = sphi 0, %s45
    %s47 = sphi 0, %s45
    %s48 = sphi 0, %s47
    %s62 = sphi 0, %s48
    %s66 = sphi 0, %s66
    %s68 = sphi 0, %s66
    %s69 = sphi 0, %s68
    %s83 = sphi 0, %s69
    %s87 = sphi 0, %s87
    %s89 = sphi 0, %s87
    %s90 = sphi 0, %s89
    %s104 = sphi 0, %s90
    %s108 = sphi 0, %s108
    %s110 = sphi 0, %s108
    %s111 = sphi 0, %s110
    %s125 = sphi 0, %s111
    %s131 = sphi 0, %s133
    %s134 = sphi 0, %s131
    %s135 = sphi 0, %s134
    %s151 = sphi 0, %s135
  $region4: #{tpu_custom_call.1} parent=0 // loop_header_branch
    %14 = sbr.rel (%p12) target = $region8
  $region5: #{tpu_custom_call.1} parent=0 // loop_body
    %s16 = ssub.s32 %s11, 1
    %s17 = ssub.s32 %s11, 2
    %s18 = sadd.s32 %s11, 1
    %s19 = ssub.s32 %s11, %s18
    %p20 = scmp.eq.s32.totalorder %s19, 0
    %s22 = sadd.s32 %s21, 1
    %s23 = scalar_select %p20, %s21, %s22
    %p26 = pneg %p20
    %p27 = scmp.eq.s32.totalorder %s11, 1
    %p28 = por %p26, %p27
    %p29 = scmp.ne.s32.totalorder %s21, %s24
    %p30 = scmp.eq.s32.totalorder %s11, 0
    %p31 = por %p29, %p30
    %p32 = scmp.ne.s32.totalorder %s21, %s24
    %p33 = scmp.eq.s32.totalorder %s16, 1
    %p34 = por %p32, %p33
    %p35 = scmp.ne.s32.totalorder %s24, %s25
    %p36 = scmp.eq.s32.totalorder %s16, 0
    %p37 = por %p35, %p36
    %p38 = scmp.ne.s32.totalorder %s24, %s25
    %p39 = scmp.eq.s32.totalorder %s17, 1
    %p40 = por %p38, %p39
    %p42 = scmp.ne.s32.totalorder %s25, %s41
    %p43 = scmp.eq.s32.totalorder %s17, 0
    %p44 = por %p42, %p43
    %s46 = sadd.s32 %s45, 1
    %p49 = scmp.eq.s32.totalorder %s11, 1
    %p50 = scmp.ne.s32.totalorder %s45, %s47
    %p51 = scmp.eq.s32.totalorder %s11, 0
    %p52 = por %p50, %p51
    %p53 = scmp.ne.s32.totalorder %s45, %s47
    %p54 = scmp.eq.s32.totalorder %s16, 1
    %p55 = por %p53, %p54
    %p56 = scmp.ne.s32.totalorder %s47, %s48
    %p57 = scmp.eq.s32.totalorder %s16, 0
    %p58 = por %p56, %p57
    %p59 = scmp.ne.s32.totalorder %s47, %s48
    %p60 = scmp.eq.s32.totalorder %s17, 1
    %p61 = por %p59, %p60
    %p63 = scmp.ne.s32.totalorder %s48, %s62
    %p64 = scmp.eq.s32.totalorder %s17, 0
    %p65 = por %p63, %p64
    %s67 = sadd.s32 %s66, 1
    %p70 = scmp.eq.s32.totalorder %s11, 1
    %p71 = scmp.ne.s32.totalorder %s66, %s68
    %p72 = scmp.eq.s32.totalorder %s11, 0
    %p73 = por %p71, %p72
    %p74 = scmp.ne.s32.totalorder %s66, %s68
    %p75 = scmp.eq.s32.totalorder %s16, 1
    %p76 = por %p74, %p75
    %p77 = scmp.ne.s32.totalorder %s68, %s69
    %p78 = scmp.eq.s32.totalorder %s16, 0
    %p79 = por %p77, %p78
    %p80 = scmp.ne.s32.totalorder %s68, %s69
    %p81 = scmp.eq.s32.totalorder %s17, 1
    %p82 = por %p80, %p81
    %p84 = scmp.ne.s32.totalorder %s69, %s83
    %p85 = scmp.eq.s32.totalorder %s17, 0
    %p86 = por %p84, %p85
    %s88 = sadd.s32 %s87, 1
    %p91 = scmp.eq.s32.totalorder %s11, 1
    %p92 = scmp.ne.s32.totalorder %s87, %s89
    %p93 = scmp.eq.s32.totalorder %s11, 0
    %p94 = por %p92, %p93
    %p95 = scmp.ne.s32.totalorder %s87, %s89
    %p96 = scmp.eq.s32.totalorder %s16, 1
    %p97 = por %p95, %p96
    %p98 = scmp.ne.s32.totalorder %s89, %s90
    %p99 = scmp.eq.s32.totalorder %s16, 0
    %p100 = por %p98, %p99
    %p101 = scmp.ne.s32.totalorder %s89, %s90
    %p102 = scmp.eq.s32.totalorder %s17, 1
    %p103 = por %p101, %p102
    %p105 = scmp.ne.s32.totalorder %s90, %s104
    %p106 = scmp.eq.s32.totalorder %s17, 0
    %p107 = por %p105, %p106
    %s109 = sadd.s32 %s108, 1
    %p112 = scmp.eq.s32.totalorder %s11, 1
    %p113 = scmp.ne.s32.totalorder %s108, %s110
    %p114 = scmp.eq.s32.totalorder %s11, 0
    %p115 = por %p113, %p114
    %p116 = scmp.ne.s32.totalorder %s108, %s110
    %p117 = scmp.eq.s32.totalorder %s16, 1
    %p118 = por %p116, %p117
    %p119 = scmp.ne.s32.totalorder %s110, %s111
    %p120 = scmp.eq.s32.totalorder %s16, 0
    %p121 = por %p119, %p120
    %p122 = scmp.ne.s32.totalorder %s110, %s111
    %p123 = scmp.eq.s32.totalorder %s17, 1
    %p124 = por %p122, %p123
    %p126 = scmp.ne.s32.totalorder %s111, %s125
    %p127 = scmp.eq.s32.totalorder %s17, 0
    %p128 = por %p126, %p127
    %s129 = ssub.s32 %s11, %s18
    %p130 = scmp.eq.s32.totalorder %s129, 0
    %s132 = sadd.s32 %s131, 1
    %s133 = scalar_select %p130, %s131, %s132
    %p136 = pneg %p130
    %p137 = scmp.eq.s32.totalorder %s11, 1
    %p138 = por %p136, %p137
    %p139 = scmp.ne.s32.totalorder %s131, %s134
    %p140 = scmp.eq.s32.totalorder %s11, 0
    %p141 = por %p139, %p140
    %p142 = scmp.ne.s32.totalorder %s131, %s134
    %p143 = scmp.eq.s32.totalorder %s16, 1
    %p144 = por %p142, %p143
    %p145 = scmp.ne.s32.totalorder %s134, %s135
    %p146 = scmp.eq.s32.totalorder %s16, 0
    %p147 = por %p145, %p146
    %p148 = scmp.ne.s32.totalorder %s134, %s135
    %p149 = scmp.eq.s32.totalorder %s17, 1
    %p150 = por %p148, %p149
    %p152 = scmp.ne.s32.totalorder %s135, %s151
    %p153 = scmp.eq.s32.totalorder %s17, 0
    %p154 = por %p152, %p153
    %p155 = scmp.le.s32.totalorder 1, %s11
    %p156 = scmp.lt.s32.totalorder %s11, 3
    %p157 = pnand %p155, %p156
    %p158 = pneg %p157
    // Predicated region
    $region9: #{tpu_custom_call.1} parent=5 // pred_check
      _
    $region10: #{tpu_custom_call.1} parent=5 // pred_check_branch
      %160 = sbr.rel (%p157) target = $region12
    $region11: #{tpu_custom_call.1} parent=5 // pred_region
      %s161 = ssub.s32 %s11, 1
      // Predicated region
      $region13: #{tpu_custom_call.1} parent=11 // pred_check
        %p162 = pneg %p58
      $region14: #{tpu_custom_call.1} parent=11 // pred_check_branch
        %164 = sbr.rel (%p162) target = $region16
      $region15: #{tpu_custom_call.1} parent=11 // pred_region
        _
      $region16: #{tpu_custom_call.1} parent=11 // pred_fallthru
        _
      // Predicated region
      $region17: #{tpu_custom_call.1} parent=11 // pred_check
        %p165 = pneg %p79
      $region18: #{tpu_custom_call.1} parent=11 // pred_check_branch
        %167 = sbr.rel (%p165) target = $region20
      $region19: #{tpu_custom_call.1} parent=11 // pred_region
        _
      $region20: #{tpu_custom_call.1} parent=11 // pred_fallthru
        _
      // Predicated region
      $region21: #{tpu_custom_call.1} parent=11 // pred_check
        %p168 = pneg %p100
      $region22: #{tpu_custom_call.1} parent=11 // pred_check_branch
        %170 = sbr.rel (%p168) target = $region24
      $region23: #{tpu_custom_call.1} parent=11 // pred_region
        _
      $region24: #{tpu_custom_call.1} parent=11 // pred_fallthru
        _
      // Predicated region
      $region25: #{tpu_custom_call.1} parent=11 // pred_check
        %p171 = pneg %p121
      $region26: #{tpu_custom_call.1} parent=11 // pred_check_branch
        %173 = sbr.rel (%p171) target = $region28
      $region27: #{tpu_custom_call.1} parent=11 // pred_region
        _
      $region28: #{tpu_custom_call.1} parent=11 // pred_fallthru
        _
    $region12: #{tpu_custom_call.1} parent=5 // pred_fallthru
      _
    %p174 = scmp.lt.s32.totalorder %s11, 2
    // Predicated region
    $region29: #{tpu_custom_call.1} parent=5 // pred_check
      %p175 = pneg %p174
    $region30: #{tpu_custom_call.1} parent=5 // pred_check_branch
      %177 = sbr.rel (%p175) target = $region32
    $region31: #{tpu_custom_call.1} parent=5 // pred_region
      // Predicated region
      $region33: #{tpu_custom_call.1} parent=31 // pred_check
        %p178 = pneg %p31
      $region34: #{tpu_custom_call.1} parent=31 // pred_check_branch
        %180 = sbr.rel (%p178) target = $region36
      $region35: #{tpu_custom_call.1} parent=31 // pred_region
        %s181 = smul.u32 32, %s11
        %p182 = scmp.lt.s32.totalorder %s181, 63
        %s183 = scalar_select %p182, %s181, 63
        %s184 = smul.addr %s183, 2
        %s185 = smul.addr %s184, 8
        %s186 = scalar_lea.vmem %s0, %s185
        %s187 = smul.u32 32, %s11
      $region36: #{tpu_custom_call.1} parent=31 // pred_fallthru
        _
    $region32: #{tpu_custom_call.1} parent=5 // pred_fallthru
      _
    %p188 = scmp.le.s32.totalorder 1, %s11
    %p189 = scmp.lt.s32.totalorder %s11, 3
    %p190 = pnand %p188, %p189
    %p191 = pneg %p190
    // Predicated region
    $region37: #{tpu_custom_call.1} parent=5 // pred_check
      _
    $region38: #{tpu_custom_call.1} parent=5 // pred_check_branch
      %193 = sbr.rel (%p190) target = $region40
    $region39: #{tpu_custom_call.1} parent=5 // pred_region
      %s194 = ssub.s32 %s11, 1
      %s195 = smul.u32 32, %s16
      %p196 = scmp.lt.s32.totalorder %s195, 63
      %s197 = scalar_select %p196, %s195, 63
      %s198 = smul.addr %s197, 2
      %s199 = smul.addr %s198, 8
      %s200 = scalar_lea.vmem %s0, %s199
      %p201 = pneg %p37
      %p202 = pneg %p34
      %p203 = pneg %p58
      %p204 = pneg %p55
      %p205 = pneg %p79
      %p206 = pneg %p76
      %p207 = pneg %p100
      %p208 = pneg %p97
      %p209 = pneg %p121
      %p210 = pneg %p118
      %p211 = pneg %p147
      %p212 = pneg %p144
      %s213 = smul.u32 4, %s16
      %p214 = scmp.lt.s32.totalorder %s213, 7
      %s215 = scalar_select %p214, %s213, 7
      %s216 = smul.addr %s215, 8
      %s217 = scalar_lea.vmem %s5, %s216
      %s218 = smul.u32 32, %s16
      %p219 = scmp.lt.s32.totalorder %s218, 63
      %s220 = scalar_select %p219, %s218, 63
      %s221 = smul.addr %s220, 2
      %s222 = smul.addr %s221, 8
      %s223 = scalar_lea.vmem %s0, %s222
      %s224 = smul.u32 32, %s16
      %s225 = smul.u32 4, %s16
      %p226 = scmp.lt.s32.totalorder %s225, 7
      %s227 = scalar_select %p226, %s225, 7
      %s228 = smul.addr %s227, 8
      %s229 = scalar_lea.vmem %s5, %s228
      %s230 = smul.u32 4, %s16
      %v231 = vld [vmem:[%s223] sm:$0xff]
      %v232 = vld [vmem:[%s223 + $0x8] sm:$0xf]
      %v233 = vld [vmem:[%s223 + $0x10] sm:$0xff]
      %v234 = vld [vmem:[%s223 + $0x18] sm:$0xf]
      %v235 = vld [vmem:[%s223 + $0x20] sm:$0xff]
      %v236 = vld [vmem:[%s223 + $0x28] sm:$0xf]
      %v237 = vld [vmem:[%s223 + $0x30] sm:$0xff]
      %v238 = vld [vmem:[%s223 + $0x38] sm:$0xf]
      %v239 = vld [vmem:[%s223 + $0x40] sm:$0xff]
      %v240 = vld [vmem:[%s223 + $0x48] sm:$0xf]
      %v241 = vld [vmem:[%s223 + $0x50] sm:$0xff]
      %v242 = vld [vmem:[%s223 + $0x58] sm:$0xf]
      %v243 = vld [vmem:[%s223 + $0x60] sm:$0xff]
      %v244 = vld [vmem:[%s223 + $0x68] sm:$0xf]
      %v245 = vld [vmem:[%s223 + $0x70] sm:$0xff]
      %v246 = vld [vmem:[%s223 + $0x78] sm:$0xf]
      %v247 = vld [vmem:[%s223 + $0x80] sm:$0xff]
      %v248 = vld [vmem:[%s223 + $0x88] sm:$0xf]
      %v249 = vld [vmem:[%s223 + $0x90] sm:$0xff]
      %v250 = vld [vmem:[%s223 + $0x98] sm:$0xf]
      %v251 = vld [vmem:[%s223 + $0xa0] sm:$0xff]
      %v252 = vld [vmem:[%s223 + $0xa8] sm:$0xf]
      %v253 = vld [vmem:[%s223 + $0xb0] sm:$0xff]
      %v254 = vld [vmem:[%s223 + $0xb8] sm:$0xf]
      %v255 = vld [vmem:[%s223 + $0xc0] sm:$0xff]
      %v256 = vld [vmem:[%s223 + $0xc8] sm:$0xf]
      %v257 = vld [vmem:[%s223 + $0xd0] sm:$0xff]
      %v258 = vld [vmem:[%s223 + $0xd8] sm:$0xf]
      %v259 = vld [vmem:[%s223 + $0xe0] sm:$0xff]
      %v260 = vld [vmem:[%s223 + $0xe8] sm:$0xf]
      %v261 = vld [vmem:[%s223 + $0xf0] sm:$0xff]
      %v262 = vld [vmem:[%s223 + $0xf8] sm:$0xf]
      %v263 = vld [vmem:[%s223 + $0x100] sm:$0xff]
      %v264 = vld [vmem:[%s223 + $0x108] sm:$0xf]
      %v265 = vld [vmem:[%s223 + $0x110] sm:$0xff]
      %v266 = vld [vmem:[%s223 + $0x118] sm:$0xf]
      %v267 = vld [vmem:[%s223 + $0x120] sm:$0xff]
      %v268 = vld [vmem:[%s223 + $0x128] sm:$0xf]
      %v269 = vld [vmem:[%s223 + $0x130] sm:$0xff]
      %v270 = vld [vmem:[%s223 + $0x138] sm:$0xf]
      %v271 = vld [vmem:[%s223 + $0x140] sm:$0xff]
      %v272 = vld [vmem:[%s223 + $0x148] sm:$0xf]
      %v273 = vld [vmem:[%s223 + $0x150] sm:$0xff]
      %v274 = vld [vmem:[%s223 + $0x158] sm:$0xf]
      %v275 = vld [vmem:[%s223 + $0x160] sm:$0xff]
      %v276 = vld [vmem:[%s223 + $0x168] sm:$0xf]
      %v277 = vld [vmem:[%s223 + $0x170] sm:$0xff]
      %v278 = vld [vmem:[%s223 + $0x178] sm:$0xf]
      %v279 = vld [vmem:[%s223 + $0x180] sm:$0xff]
      %v280 = vld [vmem:[%s223 + $0x188] sm:$0xf]
      %v281 = vld [vmem:[%s223 + $0x190] sm:$0xff]
      %v282 = vld [vmem:[%s223 + $0x198] sm:$0xf]
      %v283 = vld [vmem:[%s223 + $0x1a0] sm:$0xff]
      %v284 = vld [vmem:[%s223 + $0x1a8] sm:$0xf]
      %v285 = vld [vmem:[%s223 + $0x1b0] sm:$0xff]
      %v286 = vld [vmem:[%s223 + $0x1b8] sm:$0xf]
      %v287 = vld [vmem:[%s223 + $0x1c0] sm:$0xff]
      %v288 = vld [vmem:[%s223 + $0x1c8] sm:$0xf]
      %v289 = vld [vmem:[%s223 + $0x1d0] sm:$0xff]
      %v290 = vld [vmem:[%s223 + $0x1d8] sm:$0xf]
      %v291 = vld [vmem:[%s223 + $0x1e0] sm:$0xff]
      %v292 = vld [vmem:[%s223 + $0x1e8] sm:$0xf]
      %v293 = vld [vmem:[%s223 + $0x1f0] sm:$0xff]
      %v294 = vld [vmem:[%s223 + $0x1f8] sm:$0xf]
      %v295 = vmul.f32 %v231, %v231
      %v296 = vmul.f32 %v232, %v232
      %v297 = vmul.f32 %v233, %v233
      %v298 = vmul.f32 %v234, %v234
      %v299 = vmul.f32 %v235, %v235
      %v300 = vmul.f32 %v236, %v236
      %v301 = vmul.f32 %v237, %v237
      %v302 = vmul.f32 %v238, %v238
      %v303 = vmul.f32 %v239, %v239
      %v304 = vmul.f32 %v240, %v240
      %v305 = vmul.f32 %v241, %v241
      %v306 = vmul.f32 %v242, %v242
      %v307 = vmul.f32 %v243, %v243
      %v308 = vmul.f32 %v244, %v244
      %v309 = vmul.f32 %v245, %v245
      %v310 = vmul.f32 %v246, %v246
      %v311 = vmul.f32 %v247, %v247
      %v312 = vmul.f32 %v248, %v248
      %v313 = vmul.f32 %v249, %v249
      %v314 = vmul.f32 %v250, %v250
      %v315 = vmul.f32 %v251, %v251
      %v316 = vmul.f32 %v252, %v252
      %v317 = vmul.f32 %v253, %v253
      %v318 = vmul.f32 %v254, %v254
      %v319 = vmul.f32 %v255, %v255
      %v320 = vmul.f32 %v256, %v256
      %v321 = vmul.f32 %v257, %v257
      %v322 = vmul.f32 %v258, %v258
      %v323 = vmul.f32 %v259, %v259
      %v324 = vmul.f32 %v260, %v260
      %v325 = vmul.f32 %v261, %v261
      %v326 = vmul.f32 %v262, %v262
      %v327 = vmul.f32 %v263, %v263
      %v328 = vmul.f32 %v264, %v264
      %v329 = vmul.f32 %v265, %v265
      %v330 = vmul.f32 %v266, %v266
      %v331 = vmul.f32 %v267, %v267
      %v332 = vmul.f32 %v268, %v268
      %v333 = vmul.f32 %v269, %v269
      %v334 = vmul.f32 %v270, %v270
      %v335 = vmul.f32 %v271, %v271
      %v336 = vmul.f32 %v272, %v272
      %v337 = vmul.f32 %v273, %v273
      %v338 = vmul.f32 %v274, %v274
      %v339 = vmul.f32 %v275, %v275
      %v340 = vmul.f32 %v276, %v276
      %v341 = vmul.f32 %v277, %v277
      %v342 = vmul.f32 %v278, %v278
      %v343 = vmul.f32 %v279, %v279
      %v344 = vmul.f32 %v280, %v280
      %v345 = vmul.f32 %v281, %v281
      %v346 = vmul.f32 %v282, %v282
      %v347 = vmul.f32 %v283, %v283
      %v348 = vmul.f32 %v284, %v284
      %v349 = vmul.f32 %v285, %v285
      %v350 = vmul.f32 %v286, %v286
      %v351 = vmul.f32 %v287, %v287
      %v352 = vmul.f32 %v288, %v288
      %v353 = vmul.f32 %v289, %v289
      %v354 = vmul.f32 %v290, %v290
      %v355 = vmul.f32 %v291, %v291
      %v356 = vmul.f32 %v292, %v292
      %v357 = vmul.f32 %v293, %v293
      %v358 = vmul.f32 %v294, %v294
      %vm359 = vcmask 261120
      %v360 = vsel %vm359, %v295, 0.0
      %361 = vadd.xlane.f32.xlu0 %v360
      %v362 = vpop.xlane.xlu0 %361
      %vm363 = vcmask 257024
      %v364 = vsel %vm363, %v296, 0.0
      %365 = vadd.xlane.f32.xlu0 %v364
      %v366 = vpop.xlane.xlu0 %365
      %v367 = vsel %vm359, %v297, 0.0
      %368 = vadd.xlane.f32.xlu0 %v367
      %v369 = vpop.xlane.xlu0 %368
      %v370 = vsel %vm363, %v298, 0.0
      %371 = vadd.xlane.f32.xlu0 %v370
      %v372 = vpop.xlane.xlu0 %371
      %v373 = vsel %vm359, %v299, 0.0
      %374 = vadd.xlane.f32.xlu0 %v373
      %v375 = vpop.xlane.xlu0 %374
      %v376 = vsel %vm363, %v300, 0.0
      %377 = vadd.xlane.f32.xlu0 %v376
      %v378 = vpop.xlane.xlu0 %377
      %v379 = vsel %vm359, %v301, 0.0
      %380 = vadd.xlane.f32.xlu0 %v379
      %v381 = vpop.xlane.xlu0 %380
      %v382 = vsel %vm363, %v302, 0.0
      %383 = vadd.xlane.f32.xlu0 %v382
      %v384 = vpop.xlane.xlu0 %383
      %v385 = vsel %vm359, %v303, 0.0
      %386 = vadd.xlane.f32.xlu0 %v385
      %v387 = vpop.xlane.xlu0 %386
      %v388 = vsel %vm363, %v304, 0.0
      %389 = vadd.xlane.f32.xlu0 %v388
      %v390 = vpop.xlane.xlu0 %389
      %v391 = vsel %vm359, %v305, 0.0
      %392 = vadd.xlane.f32.xlu0 %v391
      %v393 = vpop.xlane.xlu0 %392
      %v394 = vsel %vm363, %v306, 0.0
      %395 = vadd.xlane.f32.xlu0 %v394
      %v396 = vpop.xlane.xlu0 %395
      %v397 = vsel %vm359, %v307, 0.0
      %398 = vadd.xlane.f32.xlu0 %v397
      %v399 = vpop.xlane.xlu0 %398
      %v400 = vsel %vm363, %v308, 0.0
      %401 = vadd.xlane.f32.xlu0 %v400
      %v402 = vpop.xlane.xlu0 %401
      %v403 = vsel %vm359, %v309, 0.0
      %404 = vadd.xlane.f32.xlu0 %v403
      %v405 = vpop.xlane.xlu0 %404
      %v406 = vsel %vm363, %v310, 0.0
      %407 = vadd.xlane.f32.xlu0 %v406
      %v408 = vpop.xlane.xlu0 %407
      %v409 = vsel %vm359, %v311, 0.0
      %410 = vadd.xlane.f32.xlu0 %v409
      %v411 = vpop.xlane.xlu0 %410
      %v412 = vsel %vm363, %v312, 0.0
      %413 = vadd.xlane.f32.xlu0 %v412
      %v414 = vpop.xlane.xlu0 %413
      %v415 = vsel %vm359, %v313, 0.0
      %416 = vadd.xlane.f32.xlu0 %v415
      %v417 = vpop.xlane.xlu0 %416
      %v418 = vsel %vm363, %v314, 0.0
      %419 = vadd.xlane.f32.xlu0 %v418
      %v420 = vpop.xlane.xlu0 %419
      %v421 = vsel %vm359, %v315, 0.0
      %422 = vadd.xlane.f32.xlu0 %v421
      %v423 = vpop.xlane.xlu0 %422
      %v424 = vsel %vm363, %v316, 0.0
      %425 = vadd.xlane.f32.xlu0 %v424
      %v426 = vpop.xlane.xlu0 %425
      %v427 = vsel %vm359, %v317, 0.0
      %428 = vadd.xlane.f32.xlu0 %v427
      %v429 = vpop.xlane.xlu0 %428
      %v430 = vsel %vm363, %v318, 0.0
      %431 = vadd.xlane.f32.xlu0 %v430
      %v432 = vpop.xlane.xlu0 %431
      %v433 = vsel %vm359, %v319, 0.0
      %434 = vadd.xlane.f32.xlu0 %v433
      %v435 = vpop.xlane.xlu0 %434
      %v436 = vsel %vm363, %v320, 0.0
      %437 = vadd.xlane.f32.xlu0 %v436
      %v438 = vpop.xlane.xlu0 %437
      %v439 = vsel %vm359, %v321, 0.0
      %440 = vadd.xlane.f32.xlu0 %v439
      %v441 = vpop.xlane.xlu0 %440
      %v442 = vsel %vm363, %v322, 0.0
      %443 = vadd.xlane.f32.xlu0 %v442
      %v444 = vpop.xlane.xlu0 %443
      %v445 = vsel %vm359, %v323, 0.0
      %446 = vadd.xlane.f32.xlu0 %v445
      %v447 = vpop.xlane.xlu0 %446
      %v448 = vsel %vm363, %v324, 0.0
      %449 = vadd.xlane.f32.xlu0 %v448
      %v450 = vpop.xlane.xlu0 %449
      %v451 = vsel %vm359, %v325, 0.0
      %452 = vadd.xlane.f32.xlu0 %v451
      %v453 = vpop.xlane.xlu0 %452
      %v454 = vsel %vm363, %v326, 0.0
      %455 = vadd.xlane.f32.xlu0 %v454
      %v456 = vpop.xlane.xlu0 %455
      %v457 = vsel %vm359, %v327, 0.0
      %458 = vadd.xlane.f32.xlu0 %v457
      %v459 = vpop.xlane.xlu0 %458
      %v460 = vsel %vm363, %v328, 0.0
      %461 = vadd.xlane.f32.xlu0 %v460
      %v462 = vpop.xlane.xlu0 %461
      %v463 = vsel %vm359, %v329, 0.0
      %464 = vadd.xlane.f32.xlu0 %v463
      %v465 = vpop.xlane.xlu0 %464
      %v466 = vsel %vm363, %v330, 0.0
      %467 = vadd.xlane.f32.xlu0 %v466
      %v468 = vpop.xlane.xlu0 %467
      %v469 = vsel %vm359, %v331, 0.0
      %470 = vadd.xlane.f32.xlu0 %v469
      %v471 = vpop.xlane.xlu0 %470
      %v472 = vsel %vm363, %v332, 0.0
      %473 = vadd.xlane.f32.xlu0 %v472
      %v474 = vpop.xlane.xlu0 %473
      %v475 = vsel %vm359, %v333, 0.0
      %476 = vadd.xlane.f32.xlu0 %v475
      %v477 = vpop.xlane.xlu0 %476
      %v478 = vsel %vm363, %v334, 0.0
      %479 = vadd.xlane.f32.xlu0 %v478
      %v480 = vpop.xlane.xlu0 %479
      %v481 = vsel %vm359, %v335, 0.0
      %482 = vadd.xlane.f32.xlu0 %v481
      %v483 = vpop.xlane.xlu0 %482
      %v484 = vsel %vm363, %v336, 0.0
      %485 = vadd.xlane.f32.xlu0 %v484
      %v486 = vpop.xlane.xlu0 %485
      %v487 = vsel %vm359, %v337, 0.0
      %488 = vadd.xlane.f32.xlu0 %v487
      %v489 = vpop.xlane.xlu0 %488
      %v490 = vsel %vm363, %v338, 0.0
      %491 = vadd.xlane.f32.xlu0 %v490
      %v492 = vpop.xlane.xlu0 %491
      %v493 = vsel %vm359, %v339, 0.0
      %494 = vadd.xlane.f32.xlu0 %v493
      %v495 = vpop.xlane.xlu0 %494
      %v496 = vsel %vm363, %v340, 0.0
      %497 = vadd.xlane.f32.xlu0 %v496
      %v498 = vpop.xlane.xlu0 %497
      %v499 = vsel %vm359, %v341, 0.0
      %500 = vadd.xlane.f32.xlu0 %v499
      %v501 = vpop.xlane.xlu0 %500
      %v502 = vsel %vm363, %v342, 0.0
      %503 = vadd.xlane.f32.xlu0 %v502
      %v504 = vpop.xlane.xlu0 %503
      %v505 = vsel %vm359, %v343, 0.0
      %506 = vadd.xlane.f32.xlu0 %v505
      %v507 = vpop.xlane.xlu0 %506
      %v508 = vsel %vm363, %v344, 0.0
      %509 = vadd.xlane.f32.xlu0 %v508
      %v510 = vpop.xlane.xlu0 %509
      %v511 = vsel %vm359, %v345, 0.0
      %512 = vadd.xlane.f32.xlu0 %v511
      %v513 = vpop.xlane.xlu0 %512
      %v514 = vsel %vm363, %v346, 0.0
      %515 = vadd.xlane.f32.xlu0 %v514
      %v516 = vpop.xlane.xlu0 %515
      %v517 = vsel %vm359, %v347, 0.0
      %518 = vadd.xlane.f32.xlu0 %v517
      %v519 = vpop.xlane.xlu0 %518
      %v520 = vsel %vm363, %v348, 0.0
      %521 = vadd.xlane.f32.xlu0 %v520
      %v522 = vpop.xlane.xlu0 %521
      %v523 = vsel %vm359, %v349, 0.0
      %524 = vadd.xlane.f32.xlu0 %v523
      %v525 = vpop.xlane.xlu0 %524
      %v526 = vsel %vm363, %v350, 0.0
      %527 = vadd.xlane.f32.xlu0 %v526
      %v528 = vpop.xlane.xlu0 %527
      %v529 = vsel %vm359, %v351, 0.0
      %530 = vadd.xlane.f32.xlu0 %v529
      %v531 = vpop.xlane.xlu0 %530
      %v532 = vsel %vm363, %v352, 0.0
      %533 = vadd.xlane.f32.xlu0 %v532
      %v534 = vpop.xlane.xlu0 %533
      %v535 = vsel %vm359, %v353, 0.0
      %536 = vadd.xlane.f32.xlu0 %v535
      %v537 = vpop.xlane.xlu0 %536
      %v538 = vsel %vm363, %v354, 0.0
      %539 = vadd.xlane.f32.xlu0 %v538
      %v540 = vpop.xlane.xlu0 %539
      %v541 = vsel %vm359, %v355, 0.0
      %542 = vadd.xlane.f32.xlu0 %v541
      %v543 = vpop.xlane.xlu0 %542
      %v544 = vsel %vm363, %v356, 0.0
      %545 = vadd.xlane.f32.xlu0 %v544
      %v546 = vpop.xlane.xlu0 %545
      %v547 = vsel %vm359, %v357, 0.0
      %548 = vadd.xlane.f32.xlu0 %v547
      %v549 = vpop.xlane.xlu0 %548
      %v550 = vsel %vm363, %v358, 0.0
      %551 = vadd.xlane.f32.xlu0 %v550
      %v552 = vpop.xlane.xlu0 %551
      %vm553 = vcmp.gt.f32.partialorder %v362, 1.0
      %vm554 = vcmp.gt.f32.partialorder %v366, 1.0
      %vm555 = vcmp.gt.f32.partialorder %v369, 1.0
      %vm556 = vcmp.gt.f32.partialorder %v372, 1.0
      %vm557 = vcmp.gt.f32.partialorder %v375, 1.0
      %vm558 = vcmp.gt.f32.partialorder %v378, 1.0
      %vm559 = vcmp.gt.f32.partialorder %v381, 1.0
      %vm560 = vcmp.gt.f32.partialorder %v384, 1.0
      %vm561 = vcmp.gt.f32.partialorder %v387, 1.0
      %vm562 = vcmp.gt.f32.partialorder %v390, 1.0
      %vm563 = vcmp.gt.f32.partialorder %v393, 1.0
      %vm564 = vcmp.gt.f32.partialorder %v396, 1.0
      %vm565 = vcmp.gt.f32.partialorder %v399, 1.0
      %vm566 = vcmp.gt.f32.partialorder %v402, 1.0
      %vm567 = vcmp.gt.f32.partialorder %v405, 1.0
      %vm568 = vcmp.gt.f32.partialorder %v408, 1.0
      %vm569 = vcmp.gt.f32.partialorder %v411, 1.0
      %vm570 = vcmp.gt.f32.partialorder %v414, 1.0
      %vm571 = vcmp.gt.f32.partialorder %v417, 1.0
      %vm572 = vcmp.gt.f32.partialorder %v420, 1.0
      %vm573 = vcmp.gt.f32.partialorder %v423, 1.0
      %vm574 = vcmp.gt.f32.partialorder %v426, 1.0
      %vm575 = vcmp.gt.f32.partialorder %v429, 1.0
      %vm576 = vcmp.gt.f32.partialorder %v432, 1.0
      %vm577 = vcmp.gt.f32.partialorder %v435, 1.0
      %vm578 = vcmp.gt.f32.partialorder %v438, 1.0
      %vm579 = vcmp.gt.f32.partialorder %v441, 1.0
      %vm580 = vcmp.gt.f32.partialorder %v444, 1.0
      %vm581 = vcmp.gt.f32.partialorder %v447, 1.0
      %vm582 = vcmp.gt.f32.partialorder %v450, 1.0
      %vm583 = vcmp.gt.f32.partialorder %v453, 1.0
      %vm584 = vcmp.gt.f32.partialorder %v456, 1.0
      %vm585 = vcmp.gt.f32.partialorder %v459, 1.0
      %vm586 = vcmp.gt.f32.partialorder %v462, 1.0
      %vm587 = vcmp.gt.f32.partialorder %v465, 1.0
      %vm588 = vcmp.gt.f32.partialorder %v468, 1.0
      %vm589 = vcmp.gt.f32.partialorder %v471, 1.0
      %vm590 = vcmp.gt.f32.partialorder %v474, 1.0
      %vm591 = vcmp.gt.f32.partialorder %v477, 1.0
      %vm592 = vcmp.gt.f32.partialorder %v480, 1.0
      %vm593 = vcmp.gt.f32.partialorder %v483, 1.0
      %vm594 = vcmp.gt.f32.partialorder %v486, 1.0
      %vm595 = vcmp.gt.f32.partialorder %v489, 1.0
      %vm596 = vcmp.gt.f32.partialorder %v492, 1.0
      %vm597 = vcmp.gt.f32.partialorder %v495, 1.0
      %vm598 = vcmp.gt.f32.partialorder %v498, 1.0
      %vm599 = vcmp.gt.f32.partialorder %v501, 1.0
      %vm600 = vcmp.gt.f32.partialorder %v504, 1.0
      %vm601 = vcmp.gt.f32.partialorder %v507, 1.0
      %vm602 = vcmp.gt.f32.partialorder %v510, 1.0
      %vm603 = vcmp.gt.f32.partialorder %v513, 1.0
      %vm604 = vcmp.gt.f32.partialorder %v516, 1.0
      %vm605 = vcmp.gt.f32.partialorder %v519, 1.0
      %vm606 = vcmp.gt.f32.partialorder %v522, 1.0
      %vm607 = vcmp.gt.f32.partialorder %v525, 1.0
      %vm608 = vcmp.gt.f32.partialorder %v528, 1.0
      %vm609 = vcmp.gt.f32.partialorder %v531, 1.0
      %vm610 = vcmp.gt.f32.partialorder %v534, 1.0
      %vm611 = vcmp.gt.f32.partialorder %v537, 1.0
      %vm612 = vcmp.gt.f32.partialorder %v540, 1.0
      %vm613 = vcmp.gt.f32.partialorder %v543, 1.0
      %vm614 = vcmp.gt.f32.partialorder %v546, 1.0
      %vm615 = vcmp.gt.f32.partialorder %v549, 1.0
      %vm616 = vcmp.gt.f32.partialorder %v552, 1.0
      %v617 = vrsqrt.pop %v362
      %v618 = vrsqrt.pop %v366
      %v619 = vrsqrt.pop %v369
      %v620 = vrsqrt.pop %v372
      %v621 = vrsqrt.pop %v375
      %v622 = vrsqrt.pop %v378
      %v623 = vrsqrt.pop %v381
      %v624 = vrsqrt.pop %v384
      %v625 = vrsqrt.pop %v387
      %v626 = vrsqrt.pop %v390
      %v627 = vrsqrt.pop %v393
      %v628 = vrsqrt.pop %v396
      %v629 = vrsqrt.pop %v399
      %v630 = vrsqrt.pop %v402
      %v631 = vrsqrt.pop %v405
      %v632 = vrsqrt.pop %v408
      %v633 = vrsqrt.pop %v411
      %v634 = vrsqrt.pop %v414
      %v635 = vrsqrt.pop %v417
      %v636 = vrsqrt.pop %v420
      %v637 = vrsqrt.pop %v423
      %v638 = vrsqrt.pop %v426
      %v639 = vrsqrt.pop %v429
      %v640 = vrsqrt.pop %v432
      %v641 = vrsqrt.pop %v435
      %v642 = vrsqrt.pop %v438
      %v643 = vrsqrt.pop %v441
      %v644 = vrsqrt.pop %v444
      %v645 = vrsqrt.pop %v447
      %v646 = vrsqrt.pop %v450
      %v647 = vrsqrt.pop %v453
      %v648 = vrsqrt.pop %v456
      %v649 = vrsqrt.pop %v459
      %v650 = vrsqrt.pop %v462
      %v651 = vrsqrt.pop %v465
      %v652 = vrsqrt.pop %v468
      %v653 = vrsqrt.pop %v471
      %v654 = vrsqrt.pop %v474
      %v655 = vrsqrt.pop %v477
      %v656 = vrsqrt.pop %v480
      %v657 = vrsqrt.pop %v483
      %v658 = vrsqrt.pop %v486
      %v659 = vrsqrt.pop %v489
      %v660 = vrsqrt.pop %v492
      %v661 = vrsqrt.pop %v495
      %v662 = vrsqrt.pop %v498
      %v663 = vrsqrt.pop %v501
      %v664 = vrsqrt.pop %v504
      %v665 = vrsqrt.pop %v507
      %v666 = vrsqrt.pop %v510
      %v667 = vrsqrt.pop %v513
      %v668 = vrsqrt.pop %v516
      %v669 = vrsqrt.pop %v519
      %v670 = vrsqrt.pop %v522
      %v671 = vrsqrt.pop %v525
      %v672 = vrsqrt.pop %v528
      %v673 = vrsqrt.pop %v531
      %v674 = vrsqrt.pop %v534
      %v675 = vrsqrt.pop %v537
      %v676 = vrsqrt.pop %v540
      %v677 = vrsqrt.pop %v543
      %v678 = vrsqrt.pop %v546
      %v679 = vrsqrt.pop %v549
      %v680 = vrsqrt.pop %v552
      %v681 = vsel %vm553, %v617, 1.0
      %v682 = vsel %vm554, %v618, 1.0
      %v683 = vsel %vm555, %v619, 1.0
      %v684 = vsel %vm556, %v620, 1.0
      %v685 = vsel %vm557, %v621, 1.0
      %v686 = vsel %vm558, %v622, 1.0
      %v687 = vsel %vm559, %v623, 1.0
      %v688 = vsel %vm560, %v624, 1.0
      %v689 = vsel %vm561, %v625, 1.0
      %v690 = vsel %vm562, %v626, 1.0
      %v691 = vsel %vm563, %v627, 1.0
      %v692 = vsel %vm564, %v628, 1.0
      %v693 = vsel %vm565, %v629, 1.0
      %v694 = vsel %vm566, %v630, 1.0
      %v695 = vsel %vm567, %v631, 1.0
      %v696 = vsel %vm568, %v632, 1.0
      %v697 = vsel %vm569, %v633, 1.0
      %v698 = vsel %vm570, %v634, 1.0
      %v699 = vsel %vm571, %v635, 1.0
      %v700 = vsel %vm572, %v636, 1.0
      %v701 = vsel %vm573, %v637, 1.0
      %v702 = vsel %vm574, %v638, 1.0
      %v703 = vsel %vm575, %v639, 1.0
      %v704 = vsel %vm576, %v640, 1.0
      %v705 = vsel %vm577, %v641, 1.0
      %v706 = vsel %vm578, %v642, 1.0
      %v707 = vsel %vm579, %v643, 1.0
      %v708 = vsel %vm580, %v644, 1.0
      %v709 = vsel %vm581, %v645, 1.0
      %v710 = vsel %vm582, %v646, 1.0
      %v711 = vsel %vm583, %v647, 1.0
      %v712 = vsel %vm584, %v648, 1.0
      %v713 = vsel %vm585, %v649, 1.0
      %v714 = vsel %vm586, %v650, 1.0
      %v715 = vsel %vm587, %v651, 1.0
      %v716 = vsel %vm588, %v652, 1.0
      %v717 = vsel %vm589, %v653, 1.0
      %v718 = vsel %vm590, %v654, 1.0
      %v719 = vsel %vm591, %v655, 1.0
      %v720 = vsel %vm592, %v656, 1.0
      %v721 = vsel %vm593, %v657, 1.0
      %v722 = vsel %vm594, %v658, 1.0
      %v723 = vsel %vm595, %v659, 1.0
      %v724 = vsel %vm596, %v660, 1.0
      %v725 = vsel %vm597, %v661, 1.0
      %v726 = vsel %vm598, %v662, 1.0
      %v727 = vsel %vm599, %v663, 1.0
      %v728 = vsel %vm600, %v664, 1.0
      %v729 = vsel %vm601, %v665, 1.0
      %v730 = vsel %vm602, %v666, 1.0
      %v731 = vsel %vm603, %v667, 1.0
      %v732 = vsel %vm604, %v668, 1.0
      %v733 = vsel %vm605, %v669, 1.0
      %v734 = vsel %vm606, %v670, 1.0
      %v735 = vsel %vm607, %v671, 1.0
      %v736 = vsel %vm608, %v672, 1.0
      %v737 = vsel %vm609, %v673, 1.0
      %v738 = vsel %vm610, %v674, 1.0
      %v739 = vsel %vm611, %v675, 1.0
      %v740 = vsel %vm612, %v676, 1.0
      %v741 = vsel %vm613, %v677, 1.0
      %v742 = vsel %vm614, %v678, 1.0
      %v743 = vsel %vm615, %v679, 1.0
      %v744 = vsel %vm616, %v680, 1.0
      %v745 = vmul.f32 %v231, %v681
      %v746 = vmul.f32 %v232, %v682
      %v747 = vmul.f32 %v233, %v683
      %v748 = vmul.f32 %v234, %v684
      %v749 = vmul.f32 %v235, %v685
      %v750 = vmul.f32 %v236, %v686
      %v751 = vmul.f32 %v237, %v687
      %v752 = vmul.f32 %v238, %v688
      %v753 = vmul.f32 %v239, %v689
      %v754 = vmul.f32 %v240, %v690
      %v755 = vmul.f32 %v241, %v691
      %v756 = vmul.f32 %v242, %v692
      %v757 = vmul.f32 %v243, %v693
      %v758 = vmul.f32 %v244, %v694
      %v759 = vmul.f32 %v245, %v695
      %v760 = vmul.f32 %v246, %v696
      %v761 = vmul.f32 %v247, %v697
      %v762 = vmul.f32 %v248, %v698
      %v763 = vmul.f32 %v249, %v699
      %v764 = vmul.f32 %v250, %v700
      %v765 = vmul.f32 %v251, %v701
      %v766 = vmul.f32 %v252, %v702
      %v767 = vmul.f32 %v253, %v703
      %v768 = vmul.f32 %v254, %v704
      %v769 = vmul.f32 %v255, %v705
      %v770 = vmul.f32 %v256, %v706
      %v771 = vmul.f32 %v257, %v707
      %v772 = vmul.f32 %v258, %v708
      %v773 = vmul.f32 %v259, %v709
      %v774 = vmul.f32 %v260, %v710
      %v775 = vmul.f32 %v261, %v711
      %v776 = vmul.f32 %v262, %v712
      %v777 = vmul.f32 %v263, %v713
      %v778 = vmul.f32 %v264, %v714
      %v779 = vmul.f32 %v265, %v715
      %v780 = vmul.f32 %v266, %v716
      %v781 = vmul.f32 %v267, %v717
      %v782 = vmul.f32 %v268, %v718
      %v783 = vmul.f32 %v269, %v719
      %v784 = vmul.f32 %v270, %v720
      %v785 = vmul.f32 %v271, %v721
      %v786 = vmul.f32 %v272, %v722
      %v787 = vmul.f32 %v273, %v723
      %v788 = vmul.f32 %v274, %v724
      %v789 = vmul.f32 %v275, %v725
      %v790 = vmul.f32 %v276, %v726
      %v791 = vmul.f32 %v277, %v727
      %v792 = vmul.f32 %v278, %v728
      %v793 = vmul.f32 %v279, %v729
      %v794 = vmul.f32 %v280, %v730
      %v795 = vmul.f32 %v281, %v731
      %v796 = vmul.f32 %v282, %v732
      %v797 = vmul.f32 %v283, %v733
      %v798 = vmul.f32 %v284, %v734
      %v799 = vmul.f32 %v285, %v735
      %v800 = vmul.f32 %v286, %v736
      %v801 = vmul.f32 %v287, %v737
      %v802 = vmul.f32 %v288, %v738
      %v803 = vmul.f32 %v289, %v739
      %v804 = vmul.f32 %v290, %v740
      %v805 = vmul.f32 %v291, %v741
      %v806 = vmul.f32 %v292, %v742
      %v807 = vmul.f32 %v293, %v743
      %v808 = vmul.f32 %v294, %v744
      %vm873 = vcmask 1046528
      %v874 = vrot.slane %v745, 1
      %v875 = vrot.slane %v746, 1
      %v876 = vsel %vm873, %v874, %v875
      %v877 = vrot.slane %v747, 1
      %v878 = vrot.slane %v748, 1
      %v879 = vsel %vm873, %v877, %v878
      %v880 = vrot.slane %v749, 1
      %v881 = vrot.slane %v750, 1
      %v882 = vsel %vm873, %v880, %v881
      %v883 = vrot.slane %v751, 1
      %v884 = vrot.slane %v752, 1
      %v885 = vsel %vm873, %v883, %v884
      %v886 = vrot.slane %v753, 1
      %v887 = vrot.slane %v754, 1
      %v888 = vsel %vm873, %v886, %v887
      %v889 = vrot.slane %v755, 1
      %v890 = vrot.slane %v756, 1
      %v891 = vsel %vm873, %v889, %v890
      %v892 = vrot.slane %v757, 1
      %v893 = vrot.slane %v758, 1
      %v894 = vsel %vm873, %v892, %v893
      %v895 = vrot.slane %v759, 1
      %v896 = vrot.slane %v760, 1
      %v897 = vsel %vm873, %v895, %v896
      %v898 = vrot.slane %v761, 1
      %v899 = vrot.slane %v762, 1
      %v900 = vsel %vm873, %v898, %v899
      %v901 = vrot.slane %v763, 1
      %v902 = vrot.slane %v764, 1
      %v903 = vsel %vm873, %v901, %v902
      %v904 = vrot.slane %v765, 1
      %v905 = vrot.slane %v766, 1
      %v906 = vsel %vm873, %v904, %v905
      %v907 = vrot.slane %v767, 1
      %v908 = vrot.slane %v768, 1
      %v909 = vsel %vm873, %v907, %v908
      %v910 = vrot.slane %v769, 1
      %v911 = vrot.slane %v770, 1
      %v912 = vsel %vm873, %v910, %v911
      %v913 = vrot.slane %v771, 1
      %v914 = vrot.slane %v772, 1
      %v915 = vsel %vm873, %v913, %v914
      %v916 = vrot.slane %v773, 1
      %v917 = vrot.slane %v774, 1
      %v918 = vsel %vm873, %v916, %v917
      %v919 = vrot.slane %v775, 1
      %v920 = vrot.slane %v776, 1
      %v921 = vsel %vm873, %v919, %v920
      %v922 = vrot.slane %v777, 1
      %v923 = vrot.slane %v778, 1
      %v924 = vsel %vm873, %v922, %v923
      %v925 = vrot.slane %v779, 1
      %v926 = vrot.slane %v780, 1
      %v927 = vsel %vm873, %v925, %v926
      %v928 = vrot.slane %v781, 1
      %v929 = vrot.slane %v782, 1
      %v930 = vsel %vm873, %v928, %v929
      %v931 = vrot.slane %v783, 1
      %v932 = vrot.slane %v784, 1
      %v933 = vsel %vm873, %v931, %v932
      %v934 = vrot.slane %v785, 1
      %v935 = vrot.slane %v786, 1
      %v936 = vsel %vm873, %v934, %v935
      %v937 = vrot.slane %v787, 1
      %v938 = vrot.slane %v788, 1
      %v939 = vsel %vm873, %v937, %v938
      %v940 = vrot.slane %v789, 1
      %v941 = vrot.slane %v790, 1
      %v942 = vsel %vm873, %v940, %v941
      %v943 = vrot.slane %v791, 1
      %v944 = vrot.slane %v792, 1
      %v945 = vsel %vm873, %v943, %v944
      %v946 = vrot.slane %v793, 1
      %v947 = vrot.slane %v794, 1
      %v948 = vsel %vm873, %v946, %v947
      %v949 = vrot.slane %v795, 1
      %v950 = vrot.slane %v796, 1
      %v951 = vsel %vm873, %v949, %v950
      %v952 = vrot.slane %v797, 1
      %v953 = vrot.slane %v798, 1
      %v954 = vsel %vm873, %v952, %v953
      %v955 = vrot.slane %v799, 1
      %v956 = vrot.slane %v800, 1
      %v957 = vsel %vm873, %v955, %v956
      %v958 = vrot.slane %v801, 1
      %v959 = vrot.slane %v802, 1
      %v960 = vsel %vm873, %v958, %v959
      %v961 = vrot.slane %v803, 1
      %v962 = vrot.slane %v804, 1
      %v963 = vsel %vm873, %v961, %v962
      %v964 = vrot.slane %v805, 1
      %v965 = vrot.slane %v806, 1
      %v966 = vsel %vm873, %v964, %v965
      %v967 = vrot.slane %v807, 1
      %v968 = vrot.slane %v808, 1
      %v969 = vsel %vm873, %v967, %v968
      %970 = vrot.lane.b32.xlu0 %v876, 32
      %v971 = vpop.permute.xlu0 %970
      %972 = vrot.lane.b32.xlu0 %v879, 32
      %v973 = vpop.permute.xlu0 %972
      %974 = vrot.lane.b32.xlu0 %v882, 32
      %v975 = vpop.permute.xlu0 %974
      %976 = vrot.lane.b32.xlu0 %v885, 32
      %v977 = vpop.permute.xlu0 %976
      %978 = vrot.lane.b32.xlu0 %v888, 32
      %v979 = vpop.permute.xlu0 %978
      %980 = vrot.lane.b32.xlu0 %v891, 32
      %v981 = vpop.permute.xlu0 %980
      %982 = vrot.lane.b32.xlu0 %v894, 32
      %v983 = vpop.permute.xlu0 %982
      %984 = vrot.lane.b32.xlu0 %v897, 32
      %v985 = vpop.permute.xlu0 %984
      %986 = vrot.lane.b32.xlu0 %v900, 32
      %v987 = vpop.permute.xlu0 %986
      %988 = vrot.lane.b32.xlu0 %v903, 32
      %v989 = vpop.permute.xlu0 %988
      %990 = vrot.lane.b32.xlu0 %v906, 32
      %v991 = vpop.permute.xlu0 %990
      %992 = vrot.lane.b32.xlu0 %v909, 32
      %v993 = vpop.permute.xlu0 %992
      %994 = vrot.lane.b32.xlu0 %v912, 32
      %v995 = vpop.permute.xlu0 %994
      %996 = vrot.lane.b32.xlu0 %v915, 32
      %v997 = vpop.permute.xlu0 %996
      %998 = vrot.lane.b32.xlu0 %v918, 32
      %v999 = vpop.permute.xlu0 %998
      %1000 = vrot.lane.b32.xlu0 %v921, 32
      %v1001 = vpop.permute.xlu0 %1000
      %1002 = vrot.lane.b32.xlu0 %v924, 32
      %v1003 = vpop.permute.xlu0 %1002
      %1004 = vrot.lane.b32.xlu0 %v927, 32
      %v1005 = vpop.permute.xlu0 %1004
      %1006 = vrot.lane.b32.xlu0 %v930, 32
      %v1007 = vpop.permute.xlu0 %1006
      %1008 = vrot.lane.b32.xlu0 %v933, 32
      %v1009 = vpop.permute.xlu0 %1008
      %1010 = vrot.lane.b32.xlu0 %v936, 32
      %v1011 = vpop.permute.xlu0 %1010
      %1012 = vrot.lane.b32.xlu0 %v939, 32
      %v1013 = vpop.permute.xlu0 %1012
      %1014 = vrot.lane.b32.xlu0 %v942, 32
      %v1015 = vpop.permute.xlu0 %1014
      %1016 = vrot.lane.b32.xlu0 %v945, 32
      %v1017 = vpop.permute.xlu0 %1016
      %1018 = vrot.lane.b32.xlu0 %v948, 32
      %v1019 = vpop.permute.xlu0 %1018
      %1020 = vrot.lane.b32.xlu0 %v951, 32
      %v1021 = vpop.permute.xlu0 %1020
      %1022 = vrot.lane.b32.xlu0 %v954, 32
      %v1023 = vpop.permute.xlu0 %1022
      %1024 = vrot.lane.b32.xlu0 %v957, 32
      %v1025 = vpop.permute.xlu0 %1024
      %1026 = vrot.lane.b32.xlu0 %v960, 32
      %v1027 = vpop.permute.xlu0 %1026
      %1028 = vrot.lane.b32.xlu0 %v963, 32
      %v1029 = vpop.permute.xlu0 %1028
      %1030 = vrot.lane.b32.xlu0 %v966, 32
      %v1031 = vpop.permute.xlu0 %1030
      %1032 = vrot.lane.b32.xlu0 %v969, 32
      %v1033 = vpop.permute.xlu0 %1032
      %vm1066 = vcmask 1045504
      %v1067 = vrot.slane %v745, 2
      %v1068 = vrot.slane %v746, 2
      %v1069 = vsel %vm1066, %v1067, %v1068
      %v1070 = vrot.slane %v747, 2
      %v1071 = vrot.slane %v748, 2
      %v1072 = vsel %vm1066, %v1070, %v1071
      %v1073 = vrot.slane %v749, 2
      %v1074 = vrot.slane %v750, 2
      %v1075 = vsel %vm1066, %v1073, %v1074
      %v1076 = vrot.slane %v751, 2
      %v1077 = vrot.slane %v752, 2
      %v1078 = vsel %vm1066, %v1076, %v1077
      %v1079 = vrot.slane %v753, 2
      %v1080 = vrot.slane %v754, 2
      %v1081 = vsel %vm1066, %v1079, %v1080
      %v1082 = vrot.slane %v755, 2
      %v1083 = vrot.slane %v756, 2
      %v1084 = vsel %vm1066, %v1082, %v1083
      %v1085 = vrot.slane %v757, 2
      %v1086 = vrot.slane %v758, 2
      %v1087 = vsel %vm1066, %v1085, %v1086
      %v1088 = vrot.slane %v759, 2
      %v1089 = vrot.slane %v760, 2
      %v1090 = vsel %vm1066, %v1088, %v1089
      %v1091 = vrot.slane %v761, 2
      %v1092 = vrot.slane %v762, 2
      %v1093 = vsel %vm1066, %v1091, %v1092
      %v1094 = vrot.slane %v763, 2
      %v1095 = vrot.slane %v764, 2
      %v1096 = vsel %vm1066, %v1094, %v1095
      %v1097 = vrot.slane %v765, 2
      %v1098 = vrot.slane %v766, 2
      %v1099 = vsel %vm1066, %v1097, %v1098
      %v1100 = vrot.slane %v767, 2
      %v1101 = vrot.slane %v768, 2
      %v1102 = vsel %vm1066, %v1100, %v1101
      %v1103 = vrot.slane %v769, 2
      %v1104 = vrot.slane %v770, 2
      %v1105 = vsel %vm1066, %v1103, %v1104
      %v1106 = vrot.slane %v771, 2
      %v1107 = vrot.slane %v772, 2
      %v1108 = vsel %vm1066, %v1106, %v1107
      %v1109 = vrot.slane %v773, 2
      %v1110 = vrot.slane %v774, 2
      %v1111 = vsel %vm1066, %v1109, %v1110
      %v1112 = vrot.slane %v775, 2
      %v1113 = vrot.slane %v776, 2
      %v1114 = vsel %vm1066, %v1112, %v1113
      %v1115 = vrot.slane %v777, 2
      %v1116 = vrot.slane %v778, 2
      %v1117 = vsel %vm1066, %v1115, %v1116
      %v1118 = vrot.slane %v779, 2
      %v1119 = vrot.slane %v780, 2
      %v1120 = vsel %vm1066, %v1118, %v1119
      %v1121 = vrot.slane %v781, 2
      %v1122 = vrot.slane %v782, 2
      %v1123 = vsel %vm1066, %v1121, %v1122
      %v1124 = vrot.slane %v783, 2
      %v1125 = vrot.slane %v784, 2
      %v1126 = vsel %vm1066, %v1124, %v1125
      %v1127 = vrot.slane %v785, 2
      %v1128 = vrot.slane %v786, 2
      %v1129 = vsel %vm1066, %v1127, %v1128
      %v1130 = vrot.slane %v787, 2
      %v1131 = vrot.slane %v788, 2
      %v1132 = vsel %vm1066, %v1130, %v1131
      %v1133 = vrot.slane %v789, 2
      %v1134 = vrot.slane %v790, 2
      %v1135 = vsel %vm1066, %v1133, %v1134
      %v1136 = vrot.slane %v791, 2
      %v1137 = vrot.slane %v792, 2
      %v1138 = vsel %vm1066, %v1136, %v1137
      %v1139 = vrot.slane %v793, 2
      %v1140 = vrot.slane %v794, 2
      %v1141 = vsel %vm1066, %v1139, %v1140
      %v1142 = vrot.slane %v795, 2
      %v1143 = vrot.slane %v796, 2
      %v1144 = vsel %vm1066, %v1142, %v1143
      %v1145 = vrot.slane %v797, 2
      %v1146 = vrot.slane %v798, 2
      %v1147 = vsel %vm1066, %v1145, %v1146
      %v1148 = vrot.slane %v799, 2
      %v1149 = vrot.slane %v800, 2
      %v1150 = vsel %vm1066, %v1148, %v1149
      %v1151 = vrot.slane %v801, 2
      %v1152 = vrot.slane %v802, 2
      %v1153 = vsel %vm1066, %v1151, %v1152
      %v1154 = vrot.slane %v803, 2
      %v1155 = vrot.slane %v804, 2
      %v1156 = vsel %vm1066, %v1154, %v1155
      %v1157 = vrot.slane %v805, 2
      %v1158 = vrot.slane %v806, 2
      %v1159 = vsel %vm1066, %v1157, %v1158
      %v1160 = vrot.slane %v807, 2
      %v1161 = vrot.slane %v808, 2
      %v1162 = vsel %vm1066, %v1160, %v1161
      %1163 = vrot.lane.b32.xlu0 %v1069, 64
      %v1164 = vpop.permute.xlu0 %1163
      %1165 = vrot.lane.b32.xlu0 %v1072, 64
      %v1166 = vpop.permute.xlu0 %1165
      %1167 = vrot.lane.b32.xlu0 %v1075, 64
      %v1168 = vpop.permute.xlu0 %1167
      %1169 = vrot.lane.b32.xlu0 %v1078, 64
      %v1170 = vpop.permute.xlu0 %1169
      %1171 = vrot.lane.b32.xlu0 %v1081, 64
      %v1172 = vpop.permute.xlu0 %1171
      %1173 = vrot.lane.b32.xlu0 %v1084, 64
      %v1174 = vpop.permute.xlu0 %1173
      %1175 = vrot.lane.b32.xlu0 %v1087, 64
      %v1176 = vpop.permute.xlu0 %1175
      %1177 = vrot.lane.b32.xlu0 %v1090, 64
      %v1178 = vpop.permute.xlu0 %1177
      %1179 = vrot.lane.b32.xlu0 %v1093, 64
      %v1180 = vpop.permute.xlu0 %1179
      %1181 = vrot.lane.b32.xlu0 %v1096, 64
      %v1182 = vpop.permute.xlu0 %1181
      %1183 = vrot.lane.b32.xlu0 %v1099, 64
      %v1184 = vpop.permute.xlu0 %1183
      %1185 = vrot.lane.b32.xlu0 %v1102, 64
      %v1186 = vpop.permute.xlu0 %1185
      %1187 = vrot.lane.b32.xlu0 %v1105, 64
      %v1188 = vpop.permute.xlu0 %1187
      %1189 = vrot.lane.b32.xlu0 %v1108, 64
      %v1190 = vpop.permute.xlu0 %1189
      %1191 = vrot.lane.b32.xlu0 %v1111, 64
      %v1192 = vpop.permute.xlu0 %1191
      %1193 = vrot.lane.b32.xlu0 %v1114, 64
      %v1194 = vpop.permute.xlu0 %1193
      %1195 = vrot.lane.b32.xlu0 %v1117, 64
      %v1196 = vpop.permute.xlu0 %1195
      %1197 = vrot.lane.b32.xlu0 %v1120, 64
      %v1198 = vpop.permute.xlu0 %1197
      %1199 = vrot.lane.b32.xlu0 %v1123, 64
      %v1200 = vpop.permute.xlu0 %1199
      %1201 = vrot.lane.b32.xlu0 %v1126, 64
      %v1202 = vpop.permute.xlu0 %1201
      %1203 = vrot.lane.b32.xlu0 %v1129, 64
      %v1204 = vpop.permute.xlu0 %1203
      %1205 = vrot.lane.b32.xlu0 %v1132, 64
      %v1206 = vpop.permute.xlu0 %1205
      %1207 = vrot.lane.b32.xlu0 %v1135, 64
      %v1208 = vpop.permute.xlu0 %1207
      %1209 = vrot.lane.b32.xlu0 %v1138, 64
      %v1210 = vpop.permute.xlu0 %1209
      %1211 = vrot.lane.b32.xlu0 %v1141, 64
      %v1212 = vpop.permute.xlu0 %1211
      %1213 = vrot.lane.b32.xlu0 %v1144, 64
      %v1214 = vpop.permute.xlu0 %1213
      %1215 = vrot.lane.b32.xlu0 %v1147, 64
      %v1216 = vpop.permute.xlu0 %1215
      %1217 = vrot.lane.b32.xlu0 %v1150, 64
      %v1218 = vpop.permute.xlu0 %1217
      %1219 = vrot.lane.b32.xlu0 %v1153, 64
      %v1220 = vpop.permute.xlu0 %1219
      %1221 = vrot.lane.b32.xlu0 %v1156, 64
      %v1222 = vpop.permute.xlu0 %1221
      %1223 = vrot.lane.b32.xlu0 %v1159, 64
      %v1224 = vpop.permute.xlu0 %1223
      %1225 = vrot.lane.b32.xlu0 %v1162, 64
      %v1226 = vpop.permute.xlu0 %1225
      %vm1259 = vcmask 1044480
      %v1260 = vrot.slane %v745, 3
      %v1261 = vrot.slane %v746, 3
      %v1262 = vsel %vm1259, %v1260, %v1261
      %v1263 = vrot.slane %v747, 3
      %v1264 = vrot.slane %v748, 3
      %v1265 = vsel %vm1259, %v1263, %v1264
      %v1266 = vrot.slane %v749, 3
      %v1267 = vrot.slane %v750, 3
      %v1268 = vsel %vm1259, %v1266, %v1267
      %v1269 = vrot.slane %v751, 3
      %v1270 = vrot.slane %v752, 3
      %v1271 = vsel %vm1259, %v1269, %v1270
      %v1272 = vrot.slane %v753, 3
      %v1273 = vrot.slane %v754, 3
      %v1274 = vsel %vm1259, %v1272, %v1273
      %v1275 = vrot.slane %v755, 3
      %v1276 = vrot.slane %v756, 3
      %v1277 = vsel %vm1259, %v1275, %v1276
      %v1278 = vrot.slane %v757, 3
      %v1279 = vrot.slane %v758, 3
      %v1280 = vsel %vm1259, %v1278, %v1279
      %v1281 = vrot.slane %v759, 3
      %v1282 = vrot.slane %v760, 3
      %v1283 = vsel %vm1259, %v1281, %v1282
      %v1284 = vrot.slane %v761, 3
      %v1285 = vrot.slane %v762, 3
      %v1286 = vsel %vm1259, %v1284, %v1285
      %v1287 = vrot.slane %v763, 3
      %v1288 = vrot.slane %v764, 3
      %v1289 = vsel %vm1259, %v1287, %v1288
      %v1290 = vrot.slane %v765, 3
      %v1291 = vrot.slane %v766, 3
      %v1292 = vsel %vm1259, %v1290, %v1291
      %v1293 = vrot.slane %v767, 3
      %v1294 = vrot.slane %v768, 3
      %v1295 = vsel %vm1259, %v1293, %v1294
      %v1296 = vrot.slane %v769, 3
      %v1297 = vrot.slane %v770, 3
      %v1298 = vsel %vm1259, %v1296, %v1297
      %v1299 = vrot.slane %v771, 3
      %v1300 = vrot.slane %v772, 3
      %v1301 = vsel %vm1259, %v1299, %v1300
      %v1302 = vrot.slane %v773, 3
      %v1303 = vrot.slane %v774, 3
      %v1304 = vsel %vm1259, %v1302, %v1303
      %v1305 = vrot.slane %v775, 3
      %v1306 = vrot.slane %v776, 3
      %v1307 = vsel %vm1259, %v1305, %v1306
      %v1308 = vrot.slane %v777, 3
      %v1309 = vrot.slane %v778, 3
      %v1310 = vsel %vm1259, %v1308, %v1309
      %v1311 = vrot.slane %v779, 3
      %v1312 = vrot.slane %v780, 3
      %v1313 = vsel %vm1259, %v1311, %v1312
      %v1314 = vrot.slane %v781, 3
      %v1315 = vrot.slane %v782, 3
      %v1316 = vsel %vm1259, %v1314, %v1315
      %v1317 = vrot.slane %v783, 3
      %v1318 = vrot.slane %v784, 3
      %v1319 = vsel %vm1259, %v1317, %v1318
      %v1320 = vrot.slane %v785, 3
      %v1321 = vrot.slane %v786, 3
      %v1322 = vsel %vm1259, %v1320, %v1321
      %v1323 = vrot.slane %v787, 3
      %v1324 = vrot.slane %v788, 3
      %v1325 = vsel %vm1259, %v1323, %v1324
      %v1326 = vrot.slane %v789, 3
      %v1327 = vrot.slane %v790, 3
      %v1328 = vsel %vm1259, %v1326, %v1327
      %v1329 = vrot.slane %v791, 3
      %v1330 = vrot.slane %v792, 3
      %v1331 = vsel %vm1259, %v1329, %v1330
      %v1332 = vrot.slane %v793, 3
      %v1333 = vrot.slane %v794, 3
      %v1334 = vsel %vm1259, %v1332, %v1333
      %v1335 = vrot.slane %v795, 3
      %v1336 = vrot.slane %v796, 3
      %v1337 = vsel %vm1259, %v1335, %v1336
      %v1338 = vrot.slane %v797, 3
      %v1339 = vrot.slane %v798, 3
      %v1340 = vsel %vm1259, %v1338, %v1339
      %v1341 = vrot.slane %v799, 3
      %v1342 = vrot.slane %v800, 3
      %v1343 = vsel %vm1259, %v1341, %v1342
      %v1344 = vrot.slane %v801, 3
      %v1345 = vrot.slane %v802, 3
      %v1346 = vsel %vm1259, %v1344, %v1345
      %v1347 = vrot.slane %v803, 3
      %v1348 = vrot.slane %v804, 3
      %v1349 = vsel %vm1259, %v1347, %v1348
      %v1350 = vrot.slane %v805, 3
      %v1351 = vrot.slane %v806, 3
      %v1352 = vsel %vm1259, %v1350, %v1351
      %v1353 = vrot.slane %v807, 3
      %v1354 = vrot.slane %v808, 3
      %v1355 = vsel %vm1259, %v1353, %v1354
      %1356 = vrot.lane.b32.xlu0 %v1262, 96
      %v1357 = vpop.permute.xlu0 %1356
      %1358 = vrot.lane.b32.xlu0 %v1265, 96
      %v1359 = vpop.permute.xlu0 %1358
      %1360 = vrot.lane.b32.xlu0 %v1268, 96
      %v1361 = vpop.permute.xlu0 %1360
      %1362 = vrot.lane.b32.xlu0 %v1271, 96
      %v1363 = vpop.permute.xlu0 %1362
      %1364 = vrot.lane.b32.xlu0 %v1274, 96
      %v1365 = vpop.permute.xlu0 %1364
      %1366 = vrot.lane.b32.xlu0 %v1277, 96
      %v1367 = vpop.permute.xlu0 %1366
      %1368 = vrot.lane.b32.xlu0 %v1280, 96
      %v1369 = vpop.permute.xlu0 %1368
      %1370 = vrot.lane.b32.xlu0 %v1283, 96
      %v1371 = vpop.permute.xlu0 %1370
      %1372 = vrot.lane.b32.xlu0 %v1286, 96
      %v1373 = vpop.permute.xlu0 %1372
      %1374 = vrot.lane.b32.xlu0 %v1289, 96
      %v1375 = vpop.permute.xlu0 %1374
      %1376 = vrot.lane.b32.xlu0 %v1292, 96
      %v1377 = vpop.permute.xlu0 %1376
      %1378 = vrot.lane.b32.xlu0 %v1295, 96
      %v1379 = vpop.permute.xlu0 %1378
      %1380 = vrot.lane.b32.xlu0 %v1298, 96
      %v1381 = vpop.permute.xlu0 %1380
      %1382 = vrot.lane.b32.xlu0 %v1301, 96
      %v1383 = vpop.permute.xlu0 %1382
      %1384 = vrot.lane.b32.xlu0 %v1304, 96
      %v1385 = vpop.permute.xlu0 %1384
      %1386 = vrot.lane.b32.xlu0 %v1307, 96
      %v1387 = vpop.permute.xlu0 %1386
      %1388 = vrot.lane.b32.xlu0 %v1310, 96
      %v1389 = vpop.permute.xlu0 %1388
      %1390 = vrot.lane.b32.xlu0 %v1313, 96
      %v1391 = vpop.permute.xlu0 %1390
      %1392 = vrot.lane.b32.xlu0 %v1316, 96
      %v1393 = vpop.permute.xlu0 %1392
      %1394 = vrot.lane.b32.xlu0 %v1319, 96
      %v1395 = vpop.permute.xlu0 %1394
      %1396 = vrot.lane.b32.xlu0 %v1322, 96
      %v1397 = vpop.permute.xlu0 %1396
      %1398 = vrot.lane.b32.xlu0 %v1325, 96
      %v1399 = vpop.permute.xlu0 %1398
      %1400 = vrot.lane.b32.xlu0 %v1328, 96
      %v1401 = vpop.permute.xlu0 %1400
      %1402 = vrot.lane.b32.xlu0 %v1331, 96
      %v1403 = vpop.permute.xlu0 %1402
      %1404 = vrot.lane.b32.xlu0 %v1334, 96
      %v1405 = vpop.permute.xlu0 %1404
      %1406 = vrot.lane.b32.xlu0 %v1337, 96
      %v1407 = vpop.permute.xlu0 %1406
      %1408 = vrot.lane.b32.xlu0 %v1340, 96
      %v1409 = vpop.permute.xlu0 %1408
      %1410 = vrot.lane.b32.xlu0 %v1343, 96
      %v1411 = vpop.permute.xlu0 %1410
      %1412 = vrot.lane.b32.xlu0 %v1346, 96
      %v1413 = vpop.permute.xlu0 %1412
      %1414 = vrot.lane.b32.xlu0 %v1349, 96
      %v1415 = vpop.permute.xlu0 %1414
      %1416 = vrot.lane.b32.xlu0 %v1352, 96
      %v1417 = vpop.permute.xlu0 %1416
      %1418 = vrot.lane.b32.xlu0 %v1355, 96
      %v1419 = vpop.permute.xlu0 %1418
      %vm1452 = vcmask 1043456
      %v1453 = vrot.slane %v745, 4
      %v1454 = vrot.slane %v746, 4
      %v1455 = vsel %vm1452, %v1453, %v1454
      %v1456 = vrot.slane %v747, 4
      %v1457 = vrot.slane %v748, 4
      %v1458 = vsel %vm1452, %v1456, %v1457
      %v1459 = vrot.slane %v749, 4
      %v1460 = vrot.slane %v750, 4
      %v1461 = vsel %vm1452, %v1459, %v1460
      %v1462 = vrot.slane %v751, 4
      %v1463 = vrot.slane %v752, 4
      %v1464 = vsel %vm1452, %v1462, %v1463
      %v1465 = vrot.slane %v753, 4
      %v1466 = vrot.slane %v754, 4
      %v1467 = vsel %vm1452, %v1465, %v1466
      %v1468 = vrot.slane %v755, 4
      %v1469 = vrot.slane %v756, 4
      %v1470 = vsel %vm1452, %v1468, %v1469
      %v1471 = vrot.slane %v757, 4
      %v1472 = vrot.slane %v758, 4
      %v1473 = vsel %vm1452, %v1471, %v1472
      %v1474 = vrot.slane %v759, 4
      %v1475 = vrot.slane %v760, 4
      %v1476 = vsel %vm1452, %v1474, %v1475
      %v1477 = vrot.slane %v761, 4
      %v1478 = vrot.slane %v762, 4
      %v1479 = vsel %vm1452, %v1477, %v1478
      %v1480 = vrot.slane %v763, 4
      %v1481 = vrot.slane %v764, 4
      %v1482 = vsel %vm1452, %v1480, %v1481
      %v1483 = vrot.slane %v765, 4
      %v1484 = vrot.slane %v766, 4
      %v1485 = vsel %vm1452, %v1483, %v1484
      %v1486 = vrot.slane %v767, 4
      %v1487 = vrot.slane %v768, 4
      %v1488 = vsel %vm1452, %v1486, %v1487
      %v1489 = vrot.slane %v769, 4
      %v1490 = vrot.slane %v770, 4
      %v1491 = vsel %vm1452, %v1489, %v1490
      %v1492 = vrot.slane %v771, 4
      %v1493 = vrot.slane %v772, 4
      %v1494 = vsel %vm1452, %v1492, %v1493
      %v1495 = vrot.slane %v773, 4
      %v1496 = vrot.slane %v774, 4
      %v1497 = vsel %vm1452, %v1495, %v1496
      %v1498 = vrot.slane %v775, 4
      %v1499 = vrot.slane %v776, 4
      %v1500 = vsel %vm1452, %v1498, %v1499
      %v1501 = vrot.slane %v777, 4
      %v1502 = vrot.slane %v778, 4
      %v1503 = vsel %vm1452, %v1501, %v1502
      %v1504 = vrot.slane %v779, 4
      %v1505 = vrot.slane %v780, 4
      %v1506 = vsel %vm1452, %v1504, %v1505
      %v1507 = vrot.slane %v781, 4
      %v1508 = vrot.slane %v782, 4
      %v1509 = vsel %vm1452, %v1507, %v1508
      %v1510 = vrot.slane %v783, 4
      %v1511 = vrot.slane %v784, 4
      %v1512 = vsel %vm1452, %v1510, %v1511
      %v1513 = vrot.slane %v785, 4
      %v1514 = vrot.slane %v786, 4
      %v1515 = vsel %vm1452, %v1513, %v1514
      %v1516 = vrot.slane %v787, 4
      %v1517 = vrot.slane %v788, 4
      %v1518 = vsel %vm1452, %v1516, %v1517
      %v1519 = vrot.slane %v789, 4
      %v1520 = vrot.slane %v790, 4
      %v1521 = vsel %vm1452, %v1519, %v1520
      %v1522 = vrot.slane %v791, 4
      %v1523 = vrot.slane %v792, 4
      %v1524 = vsel %vm1452, %v1522, %v1523
      %v1525 = vrot.slane %v793, 4
      %v1526 = vrot.slane %v794, 4
      %v1527 = vsel %vm1452, %v1525, %v1526
      %v1528 = vrot.slane %v795, 4
      %v1529 = vrot.slane %v796, 4
      %v1530 = vsel %vm1452, %v1528, %v1529
      %v1531 = vrot.slane %v797, 4
      %v1532 = vrot.slane %v798, 4
      %v1533 = vsel %vm1452, %v1531, %v1532
      %v1534 = vrot.slane %v799, 4
      %v1535 = vrot.slane %v800, 4
      %v1536 = vsel %vm1452, %v1534, %v1535
      %v1537 = vrot.slane %v801, 4
      %v1538 = vrot.slane %v802, 4
      %v1539 = vsel %vm1452, %v1537, %v1538
      %v1540 = vrot.slane %v803, 4
      %v1541 = vrot.slane %v804, 4
      %v1542 = vsel %vm1452, %v1540, %v1541
      %v1543 = vrot.slane %v805, 4
      %v1544 = vrot.slane %v806, 4
      %v1545 = vsel %vm1452, %v1543, %v1544
      %v1546 = vrot.slane %v807, 4
      %v1547 = vrot.slane %v808, 4
      %v1548 = vsel %vm1452, %v1546, %v1547
      %v1549 = vsel %vm359, %v745, %v971
      %v1550 = vsel %vm359, %v747, %v973
      %v1551 = vsel %vm359, %v749, %v975
      %v1552 = vsel %vm359, %v751, %v977
      %v1553 = vsel %vm359, %v753, %v979
      %v1554 = vsel %vm359, %v755, %v981
      %v1555 = vsel %vm359, %v757, %v983
      %v1556 = vsel %vm359, %v759, %v985
      %v1557 = vsel %vm359, %v761, %v987
      %v1558 = vsel %vm359, %v763, %v989
      %v1559 = vsel %vm359, %v765, %v991
      %v1560 = vsel %vm359, %v767, %v993
      %v1561 = vsel %vm359, %v769, %v995
      %v1562 = vsel %vm359, %v771, %v997
      %v1563 = vsel %vm359, %v773, %v999
      %v1564 = vsel %vm359, %v775, %v1001
      %v1565 = vsel %vm359, %v777, %v1003
      %v1566 = vsel %vm359, %v779, %v1005
      %v1567 = vsel %vm359, %v781, %v1007
      %v1568 = vsel %vm359, %v783, %v1009
      %v1569 = vsel %vm359, %v785, %v1011
      %v1570 = vsel %vm359, %v787, %v1013
      %v1571 = vsel %vm359, %v789, %v1015
      %v1572 = vsel %vm359, %v791, %v1017
      %v1573 = vsel %vm359, %v793, %v1019
      %v1574 = vsel %vm359, %v795, %v1021
      %v1575 = vsel %vm359, %v797, %v1023
      %v1576 = vsel %vm359, %v799, %v1025
      %v1577 = vsel %vm359, %v801, %v1027
      %v1578 = vsel %vm359, %v803, %v1029
      %v1579 = vsel %vm359, %v805, %v1031
      %v1580 = vsel %vm359, %v807, %v1033
      %vm1581 = vcmask 523264
      %v1582 = vsel %vm1581, %v1549, %v1164
      %v1583 = vsel %vm1581, %v1550, %v1166
      %v1584 = vsel %vm1581, %v1551, %v1168
      %v1585 = vsel %vm1581, %v1552, %v1170
      %v1586 = vsel %vm1581, %v1553, %v1172
      %v1587 = vsel %vm1581, %v1554, %v1174
      %v1588 = vsel %vm1581, %v1555, %v1176
      %v1589 = vsel %vm1581, %v1556, %v1178
      %v1590 = vsel %vm1581, %v1557, %v1180
      %v1591 = vsel %vm1581, %v1558, %v1182
      %v1592 = vsel %vm1581, %v1559, %v1184
      %v1593 = vsel %vm1581, %v1560, %v1186
      %v1594 = vsel %vm1581, %v1561, %v1188
      %v1595 = vsel %vm1581, %v1562, %v1190
      %v1596 = vsel %vm1581, %v1563, %v1192
      %v1597 = vsel %vm1581, %v1564, %v1194
      %v1598 = vsel %vm1581, %v1565, %v1196
      %v1599 = vsel %vm1581, %v1566, %v1198
      %v1600 = vsel %vm1581, %v1567, %v1200
      %v1601 = vsel %vm1581, %v1568, %v1202
      %v1602 = vsel %vm1581, %v1569, %v1204
      %v1603 = vsel %vm1581, %v1570, %v1206
      %v1604 = vsel %vm1581, %v1571, %v1208
      %v1605 = vsel %vm1581, %v1572, %v1210
      %v1606 = vsel %vm1581, %v1573, %v1212
      %v1607 = vsel %vm1581, %v1574, %v1214
      %v1608 = vsel %vm1581, %v1575, %v1216
      %v1609 = vsel %vm1581, %v1576, %v1218
      %v1610 = vsel %vm1581, %v1577, %v1220
      %v1611 = vsel %vm1581, %v1578, %v1222
      %v1612 = vsel %vm1581, %v1579, %v1224
      %v1613 = vsel %vm1581, %v1580, %v1226
      %vm1614 = vcmask 785408
      %v1615 = vsel %vm1614, %v1582, %v1357
      %v1616 = vsel %vm1614, %v1583, %v1359
      %v1617 = vsel %vm1614, %v1584, %v1361
      %v1618 = vsel %vm1614, %v1585, %v1363
      %v1619 = vsel %vm1614, %v1586, %v1365
      %v1620 = vsel %vm1614, %v1587, %v1367
      %v1621 = vsel %vm1614, %v1588, %v1369
      %v1622 = vsel %vm1614, %v1589, %v1371
      %v1623 = vsel %vm1614, %v1590, %v1373
      %v1624 = vsel %vm1614, %v1591, %v1375
      %v1625 = vsel %vm1614, %v1592, %v1377
      %v1626 = vsel %vm1614, %v1593, %v1379
      %v1627 = vsel %vm1614, %v1594, %v1381
      %v1628 = vsel %vm1614, %v1595, %v1383
      %v1629 = vsel %vm1614, %v1596, %v1385
      %v1630 = vsel %vm1614, %v1597, %v1387
      %v1631 = vsel %vm1614, %v1598, %v1389
      %v1632 = vsel %vm1614, %v1599, %v1391
      %v1633 = vsel %vm1614, %v1600, %v1393
      %v1634 = vsel %vm1614, %v1601, %v1395
      %v1635 = vsel %vm1614, %v1602, %v1397
      %v1636 = vsel %vm1614, %v1603, %v1399
      %v1637 = vsel %vm1614, %v1604, %v1401
      %v1638 = vsel %vm1614, %v1605, %v1403
      %v1639 = vsel %vm1614, %v1606, %v1405
      %v1640 = vsel %vm1614, %v1607, %v1407
      %v1641 = vsel %vm1614, %v1608, %v1409
      %v1642 = vsel %vm1614, %v1609, %v1411
      %v1643 = vsel %vm1614, %v1610, %v1413
      %v1644 = vsel %vm1614, %v1611, %v1415
      %v1645 = vsel %vm1614, %v1612, %v1417
      %v1646 = vsel %vm1614, %v1613, %v1419
      %v1647 = vld [vmem:[%s1] sm:$0xff]
      %v1648 = vld [vmem:[%s1 + $0x8] sm:$0xff]
      %v1649 = vld [vmem:[%s1 + $0x10] sm:$0xff]
      %v1650 = vld [vmem:[%s1 + $0x18] sm:$0xff]
      %v1651 = vld [vmem:[%s1 + $0x20] sm:$0xff]
      %v1652 = vld [vmem:[%s1 + $0x28] sm:$0xff]
      %v1653 = vld [vmem:[%s1 + $0x30] sm:$0xff]
      %v1654 = vld [vmem:[%s1 + $0x38] sm:$0xff]
      %v1655 = vld [vmem:[%s1 + $0x40] sm:$0xff]
      %v1656 = vld [vmem:[%s1 + $0x48] sm:$0xff]
      %v1657 = vld [vmem:[%s1 + $0x50] sm:$0xff]
      %v1658 = vld [vmem:[%s1 + $0x58] sm:$0xff]
      %v1659 = vld [vmem:[%s1 + $0x60] sm:$0xff]
      %v1660 = vld [vmem:[%s1 + $0x68] sm:$0xff]
      %v1661 = vld [vmem:[%s1 + $0x70] sm:$0xff]
      %v1662 = vld [vmem:[%s1 + $0x78] sm:$0xff]
      %v1663 = vld [vmem:[%s1 + $0x80] sm:$0xff]
      %v1664 = vld [vmem:[%s1 + $0x88] sm:$0xff]
      %v1665 = vld [vmem:[%s1 + $0x90] sm:$0xff]
      %v1666 = vld [vmem:[%s1 + $0x98] sm:$0xff]
      %v1667 = vsel %vm359, %v1455, 0
      %v1669 = vsel %vm359, %v1458, 0
      %v1671 = vsel %vm359, %v1461, 0
      %v1673 = vsel %vm359, %v1464, 0
      %v1675 = vsel %vm359, %v1467, 0
      %v1677 = vsel %vm359, %v1470, 0
      %v1679 = vsel %vm359, %v1473, 0
      %v1681 = vsel %vm359, %v1476, 0
      %v1683 = vsel %vm359, %v1479, 0
      %v1685 = vsel %vm359, %v1482, 0
      %v1687 = vsel %vm359, %v1485, 0
      %v1689 = vsel %vm359, %v1488, 0
      %v1691 = vsel %vm359, %v1491, 0
      %v1693 = vsel %vm359, %v1494, 0
      %v1695 = vsel %vm359, %v1497, 0
      %v1697 = vsel %vm359, %v1500, 0
      %v1699 = vsel %vm359, %v1503, 0
      %v1701 = vsel %vm359, %v1506, 0
      %v1703 = vsel %vm359, %v1509, 0
      %v1705 = vsel %vm359, %v1512, 0
      %v1707 = vsel %vm359, %v1515, 0
      %v1709 = vsel %vm359, %v1518, 0
      %v1711 = vsel %vm359, %v1521, 0
      %v1713 = vsel %vm359, %v1524, 0
      %v1715 = vsel %vm359, %v1527, 0
      %v1717 = vsel %vm359, %v1530, 0
      %v1719 = vsel %vm359, %v1533, 0
      %v1721 = vsel %vm359, %v1536, 0
      %v1723 = vsel %vm359, %v1539, 0
      %v1725 = vsel %vm359, %v1542, 0
      %v1727 = vsel %vm359, %v1545, 0
      %v1729 = vsel %vm359, %v1548, 0
      %1731 = vmatprep.subr.mxu0 0.0
      %1732 = vmatpush1.msra.mxu0 %v1647
      %1733 = vmatprep.subr.mxu0 0.0
      %1734 = vmatpush1.msra.mxu0 %v1648
      %1735 = vmatprep.subr.mxu0 0.0
      %1736 = vmatpush1.msra.mxu0 %v1649
      %1737 = vmatprep.subr.mxu0 0.0
      %1738 = vmatpush1.msra.mxu0 %v1650
      %1739 = vmatprep.subr.mxu0 0.0
      %1740 = vmatpush1.msra.mxu0 %v1651
      %1741 = vmatprep.subr.mxu0 0.0
      %1742 = vmatpush1.msra.mxu0 %v1652
      %1743 = vmatprep.subr.mxu0 0.0
      %1744 = vmatpush1.msra.mxu0 %v1653
      %1745 = vmatprep.subr.mxu0 0.0
      %1746 = vmatpush1.msra.mxu0 %v1654
      %1747 = vmatprep.subr.mxu0 0.0
      %1748 = vmatpush1.msra.mxu0 %v1655
      %1749 = vmatprep.subr.mxu0 0.0
      %1750 = vmatpush1.msra.mxu0 %v1656
      %1751 = vmatprep.subr.mxu0 0.0
      %1752 = vmatpush1.msra.mxu0 %v1657
      %1753 = vmatprep.subr.mxu0 0.0
      %1754 = vmatpush1.msra.mxu0 %v1658
      %1755 = vmatprep.subr.mxu0 0.0
      %1756 = vmatpush1.msra.mxu0 %v1659
      %1757 = vmatprep.subr.mxu0 0.0
      %1758 = vmatpush1.msra.mxu0 %v1660
      %1759 = vmatprep.subr.mxu0 0.0
      %1760 = vmatpush1.msra.mxu0 %v1661
      %1761 = vmatprep.subr.mxu0 0.0
      %1762 = vmatpush1.msra.mxu0 %v1662
      %1763 = vmatprep.subr.mxu0 0.0
      %1764 = vmatpush1.msra.mxu0 %v1663
      %1765 = vmatprep.subr.mxu0 0.0
      %1766 = vmatpush1.msra.mxu0 %v1664
      %1767 = vmatprep.subr.mxu0 0.0
      %1768 = vmatpush1.msra.mxu0 %v1665
      %1769 = vmatprep.subr.mxu0 0.0
      %1770 = vmatpush1.msra.mxu0 %v1666
      %1771 = vmatprep.subr.mxu0 0.0
      %1772 = vmatpush1.msra.mxu0 0.0
      %1773 = vmatprep.subr.mxu0 0.0
      %1774 = vmatpush1.msra.mxu0 0.0
      %1775 = vmatprep.subr.mxu0 0.0
      %1776 = vmatpush1.msra.mxu0 0.0
      %1777 = vmatprep.subr.mxu0 0.0
      %1778 = vmatpush1.msra.mxu0 0.0
      %1779 = vmatprep.subr.mxu0 0.0
      %1780 = vmatpush1.msra.mxu0 0.0
      %1781 = vmatprep.subr.mxu0 0.0
      %1782 = vmatpush1.msra.mxu0 0.0
      %1783 = vmatprep.subr.mxu0 0.0
      %1784 = vmatpush1.msra.mxu0 0.0
      %1785 = vmatprep.subr.mxu0 0.0
      %1786 = vmatpush1.msra.mxu0 0.0
      %1787 = vmatprep.subr.mxu0 0.0
      %1788 = vmatpush1.msra.mxu0 0.0
      %1789 = vmatprep.subr.mxu0 0.0
      %1790 = vmatpush1.msra.mxu0 0.0
      %1791 = vmatprep.subr.mxu0 0.0
      %1792 = vmatpush1.msra.mxu0 0.0
      %1793 = vmatprep.subr.mxu0 0.0
      %1794 = vmatpush1.msra.mxu0 0.0
      %1795 = vmatprep.mubr.f32.mxu0 %v1667
      %1796 = vmatmul.mubr.f32.gmra.mrb[0].mxu0 %v1615
      %v1797 = vpop.f32.mrb[0].mxu0
      %v1798 = vadd.f32 0.0, %v1797
      %v1799 = vpop.f32.mrb[0].mxu0
      %1800 = vmatprep.mubr.f32.mxu0 %v1669
      %1801 = vmatmul.mubr.f32.gmra.mrb[0].mxu0 %v1616
      %v1802 = vpop.f32.mrb[0].mxu0
      %v1803 = vadd.f32 0.0, %v1802
      %v1804 = vpop.f32.mrb[0].mxu0
      %1805 = vmatprep.mubr.f32.mxu0 %v1671
      %1806 = vmatmul.mubr.f32.gmra.mrb[0].mxu0 %v1617
      %v1807 = vpop.f32.mrb[0].mxu0
      %v1808 = vadd.f32 0.0, %v1807
      %v1809 = vpop.f32.mrb[0].mxu0
      %1810 = vmatprep.mubr.f32.mxu0 %v1673
      %1811 = vmatmul.mubr.f32.gmra.mrb[0].mxu0 %v1618
      %v1812 = vpop.f32.mrb[0].mxu0
      %v1813 = vadd.f32 0.0, %v1812
      %v1814 = vpop.f32.mrb[0].mxu0
      %1815 = vmatprep.mubr.f32.mxu0 %v1675
      %1816 = vmatmul.mubr.f32.gmra.mrb[0].mxu0 %v1619
      %v1817 = vpop.f32.mrb[0].mxu0
      %v1818 = vadd.f32 0.0, %v1817
      %v1819 = vpop.f32.mrb[0].mxu0
      %1820 = vmatprep.mubr.f32.mxu0 %v1677
      %1821 = vmatmul.mubr.f32.gmra.mrb[0].mxu0 %v1620
      %v1822 = vpop.f32.mrb[0].mxu0
      %v1823 = vadd.f32 0.0, %v1822
      %v1824 = vpop.f32.mrb[0].mxu0
      %1825 = vmatprep.mubr.f32.mxu0 %v1679
      %1826 = vmatmul.mubr.f32.gmra.mrb[0].mxu0 %v1621
      %v1827 = vpop.f32.mrb[0].mxu0
      %v1828 = vadd.f32 0.0, %v1827
      %v1829 = vpop.f32.mrb[0].mxu0
      %1830 = vmatprep.mubr.f32.mxu0 %v1681
      %1831 = vmatmul.mubr.f32.gmra.mrb[0].mxu0 %v1622
      %v1832 = vpop.f32.mrb[0].mxu0
      %v1833 = vadd.f32 0.0, %v1832
      %v1834 = vpop.f32.mrb[0].mxu0
      %1835 = vmatprep.mubr.f32.mxu0 %v1683
      %1836 = vmatmul.mubr.f32.gmra.mrb[0].mxu0 %v1623
      %v1837 = vpop.f32.mrb[0].mxu0
      %v1838 = vadd.f32 0.0, %v1837
      %v1839 = vpop.f32.mrb[0].mxu0
      %1840 = vmatprep.mubr.f32.mxu0 %v1685
      %1841 = vmatmul.mubr.f32.gmra.mrb[0].mxu0 %v1624
      %v1842 = vpop.f32.mrb[0].mxu0
      %v1843 = vadd.f32 0.0, %v1842
      %v1844 = vpop.f32.mrb[0].mxu0
      %1845 = vmatprep.mubr.f32.mxu0 %v1687
      %1846 = vmatmul.mubr.f32.gmra.mrb[0].mxu0 %v1625
      %v1847 = vpop.f32.mrb[0].mxu0
      %v1848 = vadd.f32 0.0, %v1847
      %v1849 = vpop.f32.mrb[0].mxu0
      %1850 = vmatprep.mubr.f32.mxu0 %v1689
      %1851 = vmatmul.mubr.f32.gmra.mrb[0].mxu0 %v1626
      %v1852 = vpop.f32.mrb[0].mxu0
      %v1853 = vadd.f32 0.0, %v1852
      %v1854 = vpop.f32.mrb[0].mxu0
      %1855 = vmatprep.mubr.f32.mxu0 %v1691
      %1856 = vmatmul.mubr.f32.gmra.mrb[0].mxu0 %v1627
      %v1857 = vpop.f32.mrb[0].mxu0
      %v1858 = vadd.f32 0.0, %v1857
      %v1859 = vpop.f32.mrb[0].mxu0
      %1860 = vmatprep.mubr.f32.mxu0 %v1693
      %1861 = vmatmul.mubr.f32.gmra.mrb[0].mxu0 %v1628
      %v1862 = vpop.f32.mrb[0].mxu0
      %v1863 = vadd.f32 0.0, %v1862
      %v1864 = vpop.f32.mrb[0].mxu0
      %1865 = vmatprep.mubr.f32.mxu0 %v1695
      %1866 = vmatmul.mubr.f32.gmra.mrb[0].mxu0 %v1629
      %v1867 = vpop.f32.mrb[0].mxu0
      %v1868 = vadd.f32 0.0, %v1867
      %v1869 = vpop.f32.mrb[0].mxu0
      %1870 = vmatprep.mubr.f32.mxu0 %v1697
      %1871 = vmatmul.mubr.f32.gmra.mrb[0].mxu0 %v1630
      %v1872 = vpop.f32.mrb[0].mxu0
      %v1873 = vadd.f32 0.0, %v1872
      %v1874 = vpop.f32.mrb[0].mxu0
      %1875 = vmatprep.mubr.f32.mxu0 %v1699
      %1876 = vmatmul.mubr.f32.gmra.mrb[0].mxu0 %v1631
      %v1877 = vpop.f32.mrb[0].mxu0
      %v1878 = vadd.f32 0.0, %v1877
      %v1879 = vpop.f32.mrb[0].mxu0
      %1880 = vmatprep.mubr.f32.mxu0 %v1701
      %1881 = vmatmul.mubr.f32.gmra.mrb[0].mxu0 %v1632
      %v1882 = vpop.f32.mrb[0].mxu0
      %v1883 = vadd.f32 0.0, %v1882
      %v1884 = vpop.f32.mrb[0].mxu0
      %1885 = vmatprep.mubr.f32.mxu0 %v1703
      %1886 = vmatmul.mubr.f32.gmra.mrb[0].mxu0 %v1633
      %v1887 = vpop.f32.mrb[0].mxu0
      %v1888 = vadd.f32 0.0, %v1887
      %v1889 = vpop.f32.mrb[0].mxu0
      %1890 = vmatprep.mubr.f32.mxu0 %v1705
      %1891 = vmatmul.mubr.f32.gmra.mrb[0].mxu0 %v1634
      %v1892 = vpop.f32.mrb[0].mxu0
      %v1893 = vadd.f32 0.0, %v1892
      %v1894 = vpop.f32.mrb[0].mxu0
      %1895 = vmatprep.mubr.f32.mxu0 %v1707
      %1896 = vmatmul.mubr.f32.gmra.mrb[0].mxu0 %v1635
      %v1897 = vpop.f32.mrb[0].mxu0
      %v1898 = vadd.f32 0.0, %v1897
      %v1899 = vpop.f32.mrb[0].mxu0
      %1900 = vmatprep.mubr.f32.mxu0 %v1709
      %1901 = vmatmul.mubr.f32.gmra.mrb[0].mxu0 %v1636
      %v1902 = vpop.f32.mrb[0].mxu0
      %v1903 = vadd.f32 0.0, %v1902
      %v1904 = vpop.f32.mrb[0].mxu0
      %1905 = vmatprep.mubr.f32.mxu0 %v1711
      %1906 = vmatmul.mubr.f32.gmra.mrb[0].mxu0 %v1637
      %v1907 = vpop.f32.mrb[0].mxu0
      %v1908 = vadd.f32 0.0, %v1907
      %v1909 = vpop.f32.mrb[0].mxu0
      %1910 = vmatprep.mubr.f32.mxu0 %v1713
      %1911 = vmatmul.mubr.f32.gmra.mrb[0].mxu0 %v1638
      %v1912 = vpop.f32.mrb[0].mxu0
      %v1913 = vadd.f32 0.0, %v1912
      %v1914 = vpop.f32.mrb[0].mxu0
      %1915 = vmatprep.mubr.f32.mxu0 %v1715
      %1916 = vmatmul.mubr.f32.gmra.mrb[0].mxu0 %v1639
      %v1917 = vpop.f32.mrb[0].mxu0
      %v1918 = vadd.f32 0.0, %v1917
      %v1919 = vpop.f32.mrb[0].mxu0
      %1920 = vmatprep.mubr.f32.mxu0 %v1717
      %1921 = vmatmul.mubr.f32.gmra.mrb[0].mxu0 %v1640
      %v1922 = vpop.f32.mrb[0].mxu0
      %v1923 = vadd.f32 0.0, %v1922
      %v1924 = vpop.f32.mrb[0].mxu0
      %1925 = vmatprep.mubr.f32.mxu0 %v1719
      %1926 = vmatmul.mubr.f32.gmra.mrb[0].mxu0 %v1641
      %v1927 = vpop.f32.mrb[0].mxu0
      %v1928 = vadd.f32 0.0, %v1927
      %v1929 = vpop.f32.mrb[0].mxu0
      %1930 = vmatprep.mubr.f32.mxu0 %v1721
      %1931 = vmatmul.mubr.f32.gmra.mrb[0].mxu0 %v1642
      %v1932 = vpop.f32.mrb[0].mxu0
      %v1933 = vadd.f32 0.0, %v1932
      %v1934 = vpop.f32.mrb[0].mxu0
      %1935 = vmatprep.mubr.f32.mxu0 %v1723
      %1936 = vmatmul.mubr.f32.gmra.mrb[0].mxu0 %v1643
      %v1937 = vpop.f32.mrb[0].mxu0
      %v1938 = vadd.f32 0.0, %v1937
      %v1939 = vpop.f32.mrb[0].mxu0
      %1940 = vmatprep.mubr.f32.mxu0 %v1725
      %1941 = vmatmul.mubr.f32.gmra.mrb[0].mxu0 %v1644
      %v1942 = vpop.f32.mrb[0].mxu0
      %v1943 = vadd.f32 0.0, %v1942
      %v1944 = vpop.f32.mrb[0].mxu0
      %1945 = vmatprep.mubr.f32.mxu0 %v1727
      %1946 = vmatmul.mubr.f32.gmra.mrb[0].mxu0 %v1645
      %v1947 = vpop.f32.mrb[0].mxu0
      %v1948 = vadd.f32 0.0, %v1947
      %v1949 = vpop.f32.mrb[0].mxu0
      %1950 = vmatprep.mubr.f32.mxu0 %v1729
      %1951 = vmatmul.mubr.f32.gmra.mrb[0].mxu0 %v1646
      %v1952 = vpop.f32.mrb[0].mxu0
      %v1953 = vadd.f32 0.0, %v1952
      %v1954 = vpop.f32.mrb[0].mxu0
      %1955 = vdwg.mxu0
      %v1956 = vrot.slane %v1798, 4
      %v1957 = vmax.f32 %v1798, %v1956
      %v1958 = vrot.slane %v1957, 2
      %v1959 = vmax.f32 %v1957, %v1958
      %v1960 = vrot.slane %v1959, 1
      %v1961 = vmax.f32 %v1959, %v1960
      %v1962 = vrot.slane %v1803, 4
      %v1963 = vmax.f32 %v1803, %v1962
      %v1964 = vrot.slane %v1963, 2
      %v1965 = vmax.f32 %v1963, %v1964
      %v1966 = vrot.slane %v1965, 1
      %v1967 = vmax.f32 %v1965, %v1966
      %v1968 = vrot.slane %v1808, 4
      %v1969 = vmax.f32 %v1808, %v1968
      %v1970 = vrot.slane %v1969, 2
      %v1971 = vmax.f32 %v1969, %v1970
      %v1972 = vrot.slane %v1971, 1
      %v1973 = vmax.f32 %v1971, %v1972
      %v1974 = vrot.slane %v1813, 4
      %v1975 = vmax.f32 %v1813, %v1974
      %v1976 = vrot.slane %v1975, 2
      %v1977 = vmax.f32 %v1975, %v1976
      %v1978 = vrot.slane %v1977, 1
      %v1979 = vmax.f32 %v1977, %v1978
      %v1980 = vrot.slane %v1818, 4
      %v1981 = vmax.f32 %v1818, %v1980
      %v1982 = vrot.slane %v1981, 2
      %v1983 = vmax.f32 %v1981, %v1982
      %v1984 = vrot.slane %v1983, 1
      %v1985 = vmax.f32 %v1983, %v1984
      %v1986 = vrot.slane %v1823, 4
      %v1987 = vmax.f32 %v1823, %v1986
      %v1988 = vrot.slane %v1987, 2
      %v1989 = vmax.f32 %v1987, %v1988
      %v1990 = vrot.slane %v1989, 1
      %v1991 = vmax.f32 %v1989, %v1990
      %v1992 = vrot.slane %v1828, 4
      %v1993 = vmax.f32 %v1828, %v1992
      %v1994 = vrot.slane %v1993, 2
      %v1995 = vmax.f32 %v1993, %v1994
      %v1996 = vrot.slane %v1995, 1
      %v1997 = vmax.f32 %v1995, %v1996
      %v1998 = vrot.slane %v1833, 4
      %v1999 = vmax.f32 %v1833, %v1998
      %v2000 = vrot.slane %v1999, 2
      %v2001 = vmax.f32 %v1999, %v2000
      %v2002 = vrot.slane %v2001, 1
      %v2003 = vmax.f32 %v2001, %v2002
      %v2004 = vrot.slane %v1838, 4
      %v2005 = vmax.f32 %v1838, %v2004
      %v2006 = vrot.slane %v2005, 2
      %v2007 = vmax.f32 %v2005, %v2006
      %v2008 = vrot.slane %v2007, 1
      %v2009 = vmax.f32 %v2007, %v2008
      %v2010 = vrot.slane %v1843, 4
      %v2011 = vmax.f32 %v1843, %v2010
      %v2012 = vrot.slane %v2011, 2
      %v2013 = vmax.f32 %v2011, %v2012
      %v2014 = vrot.slane %v2013, 1
      %v2015 = vmax.f32 %v2013, %v2014
      %v2016 = vrot.slane %v1848, 4
      %v2017 = vmax.f32 %v1848, %v2016
      %v2018 = vrot.slane %v2017, 2
      %v2019 = vmax.f32 %v2017, %v2018
      %v2020 = vrot.slane %v2019, 1
      %v2021 = vmax.f32 %v2019, %v2020
      %v2022 = vrot.slane %v1853, 4
      %v2023 = vmax.f32 %v1853, %v2022
      %v2024 = vrot.slane %v2023, 2
      %v2025 = vmax.f32 %v2023, %v2024
      %v2026 = vrot.slane %v2025, 1
      %v2027 = vmax.f32 %v2025, %v2026
      %v2028 = vrot.slane %v1858, 4
      %v2029 = vmax.f32 %v1858, %v2028
      %v2030 = vrot.slane %v2029, 2
      %v2031 = vmax.f32 %v2029, %v2030
      %v2032 = vrot.slane %v2031, 1
      %v2033 = vmax.f32 %v2031, %v2032
      %v2034 = vrot.slane %v1863, 4
      %v2035 = vmax.f32 %v1863, %v2034
      %v2036 = vrot.slane %v2035, 2
      %v2037 = vmax.f32 %v2035, %v2036
      %v2038 = vrot.slane %v2037, 1
      %v2039 = vmax.f32 %v2037, %v2038
      %v2040 = vrot.slane %v1868, 4
      %v2041 = vmax.f32 %v1868, %v2040
      %v2042 = vrot.slane %v2041, 2
      %v2043 = vmax.f32 %v2041, %v2042
      %v2044 = vrot.slane %v2043, 1
      %v2045 = vmax.f32 %v2043, %v2044
      %v2046 = vrot.slane %v1873, 4
      %v2047 = vmax.f32 %v1873, %v2046
      %v2048 = vrot.slane %v2047, 2
      %v2049 = vmax.f32 %v2047, %v2048
      %v2050 = vrot.slane %v2049, 1
      %v2051 = vmax.f32 %v2049, %v2050
      %v2052 = vrot.slane %v1878, 4
      %v2053 = vmax.f32 %v1878, %v2052
      %v2054 = vrot.slane %v2053, 2
      %v2055 = vmax.f32 %v2053, %v2054
      %v2056 = vrot.slane %v2055, 1
      %v2057 = vmax.f32 %v2055, %v2056
      %v2058 = vrot.slane %v1883, 4
      %v2059 = vmax.f32 %v1883, %v2058
      %v2060 = vrot.slane %v2059, 2
      %v2061 = vmax.f32 %v2059, %v2060
      %v2062 = vrot.slane %v2061, 1
      %v2063 = vmax.f32 %v2061, %v2062
      %v2064 = vrot.slane %v1888, 4
      %v2065 = vmax.f32 %v1888, %v2064
      %v2066 = vrot.slane %v2065, 2
      %v2067 = vmax.f32 %v2065, %v2066
      %v2068 = vrot.slane %v2067, 1
      %v2069 = vmax.f32 %v2067, %v2068
      %v2070 = vrot.slane %v1893, 4
      %v2071 = vmax.f32 %v1893, %v2070
      %v2072 = vrot.slane %v2071, 2
      %v2073 = vmax.f32 %v2071, %v2072
      %v2074 = vrot.slane %v2073, 1
      %v2075 = vmax.f32 %v2073, %v2074
      %v2076 = vrot.slane %v1898, 4
      %v2077 = vmax.f32 %v1898, %v2076
      %v2078 = vrot.slane %v2077, 2
      %v2079 = vmax.f32 %v2077, %v2078
      %v2080 = vrot.slane %v2079, 1
      %v2081 = vmax.f32 %v2079, %v2080
      %v2082 = vrot.slane %v1903, 4
      %v2083 = vmax.f32 %v1903, %v2082
      %v2084 = vrot.slane %v2083, 2
      %v2085 = vmax.f32 %v2083, %v2084
      %v2086 = vrot.slane %v2085, 1
      %v2087 = vmax.f32 %v2085, %v2086
      %v2088 = vrot.slane %v1908, 4
      %v2089 = vmax.f32 %v1908, %v2088
      %v2090 = vrot.slane %v2089, 2
      %v2091 = vmax.f32 %v2089, %v2090
      %v2092 = vrot.slane %v2091, 1
      %v2093 = vmax.f32 %v2091, %v2092
      %v2094 = vrot.slane %v1913, 4
      %v2095 = vmax.f32 %v1913, %v2094
      %v2096 = vrot.slane %v2095, 2
      %v2097 = vmax.f32 %v2095, %v2096
      %v2098 = vrot.slane %v2097, 1
      %v2099 = vmax.f32 %v2097, %v2098
      %v2100 = vrot.slane %v1918, 4
      %v2101 = vmax.f32 %v1918, %v2100
      %v2102 = vrot.slane %v2101, 2
      %v2103 = vmax.f32 %v2101, %v2102
      %v2104 = vrot.slane %v2103, 1
      %v2105 = vmax.f32 %v2103, %v2104
      %v2106 = vrot.slane %v1923, 4
      %v2107 = vmax.f32 %v1923, %v2106
      %v2108 = vrot.slane %v2107, 2
      %v2109 = vmax.f32 %v2107, %v2108
      %v2110 = vrot.slane %v2109, 1
      %v2111 = vmax.f32 %v2109, %v2110
      %v2112 = vrot.slane %v1928, 4
      %v2113 = vmax.f32 %v1928, %v2112
      %v2114 = vrot.slane %v2113, 2
      %v2115 = vmax.f32 %v2113, %v2114
      %v2116 = vrot.slane %v2115, 1
      %v2117 = vmax.f32 %v2115, %v2116
      %v2118 = vrot.slane %v1933, 4
      %v2119 = vmax.f32 %v1933, %v2118
      %v2120 = vrot.slane %v2119, 2
      %v2121 = vmax.f32 %v2119, %v2120
      %v2122 = vrot.slane %v2121, 1
      %v2123 = vmax.f32 %v2121, %v2122
      %v2124 = vrot.slane %v1938, 4
      %v2125 = vmax.f32 %v1938, %v2124
      %v2126 = vrot.slane %v2125, 2
      %v2127 = vmax.f32 %v2125, %v2126
      %v2128 = vrot.slane %v2127, 1
      %v2129 = vmax.f32 %v2127, %v2128
      %v2130 = vrot.slane %v1943, 4
      %v2131 = vmax.f32 %v1943, %v2130
      %v2132 = vrot.slane %v2131, 2
      %v2133 = vmax.f32 %v2131, %v2132
      %v2134 = vrot.slane %v2133, 1
      %v2135 = vmax.f32 %v2133, %v2134
      %v2136 = vrot.slane %v1948, 4
      %v2137 = vmax.f32 %v1948, %v2136
      %v2138 = vrot.slane %v2137, 2
      %v2139 = vmax.f32 %v2137, %v2138
      %v2140 = vrot.slane %v2139, 1
      %v2141 = vmax.f32 %v2139, %v2140
      %v2142 = vrot.slane %v1953, 4
      %v2143 = vmax.f32 %v1953, %v2142
      %v2144 = vrot.slane %v2143, 2
      %v2145 = vmax.f32 %v2143, %v2144
      %v2146 = vrot.slane %v2145, 1
      %v2147 = vmax.f32 %v2145, %v2146
      %v2148 = vld [vmem:[%s2] sm:$0x1]
      %v2150 = vlaneseq
      %v2151 = vshrl.u32 %v2150, 7
      %v2152 = vsub.s32 0, %v2151
      %v2153 = vrot.slane %v2148, %v2152
      %v2155 = vadd.f32 %v1961, %v2153
      %v2156 = vadd.f32 %v1967, %v2153
      %v2157 = vadd.f32 %v1973, %v2153
      %v2158 = vadd.f32 %v1979, %v2153
      %v2159 = vadd.f32 %v1985, %v2153
      %v2160 = vadd.f32 %v1991, %v2153
      %v2161 = vadd.f32 %v1997, %v2153
      %v2162 = vadd.f32 %v2003, %v2153
      %v2163 = vadd.f32 %v2009, %v2153
      %v2164 = vadd.f32 %v2015, %v2153
      %v2165 = vadd.f32 %v2021, %v2153
      %v2166 = vadd.f32 %v2027, %v2153
      %v2167 = vadd.f32 %v2033, %v2153
      %v2168 = vadd.f32 %v2039, %v2153
      %v2169 = vadd.f32 %v2045, %v2153
      %v2170 = vadd.f32 %v2051, %v2153
      %v2171 = vadd.f32 %v2057, %v2153
      %v2172 = vadd.f32 %v2063, %v2153
      %v2173 = vadd.f32 %v2069, %v2153
      %v2174 = vadd.f32 %v2075, %v2153
      %v2175 = vadd.f32 %v2081, %v2153
      %v2176 = vadd.f32 %v2087, %v2153
      %v2177 = vadd.f32 %v2093, %v2153
      %v2178 = vadd.f32 %v2099, %v2153
      %v2179 = vadd.f32 %v2105, %v2153
      %v2180 = vadd.f32 %v2111, %v2153
      %v2181 = vadd.f32 %v2117, %v2153
      %v2182 = vadd.f32 %v2123, %v2153
      %v2183 = vadd.f32 %v2129, %v2153
      %v2184 = vadd.f32 %v2135, %v2153
      %v2185 = vadd.f32 %v2141, %v2153
      %v2186 = vadd.f32 %v2147, %v2153
      %v2187 = vtanh.pop %v2155
      %v2188 = vtanh.pop %v2156
      %v2189 = vtanh.pop %v2157
      %v2190 = vtanh.pop %v2158
      %v2191 = vtanh.pop %v2159
      %v2192 = vtanh.pop %v2160
      %v2193 = vtanh.pop %v2161
      %v2194 = vtanh.pop %v2162
      %v2195 = vtanh.pop %v2163
      %v2196 = vtanh.pop %v2164
      %v2197 = vtanh.pop %v2165
      %v2198 = vtanh.pop %v2166
      %v2199 = vtanh.pop %v2167
      %v2200 = vtanh.pop %v2168
      %v2201 = vtanh.pop %v2169
      %v2202 = vtanh.pop %v2170
      %v2203 = vtanh.pop %v2171
      %v2204 = vtanh.pop %v2172
      %v2205 = vtanh.pop %v2173
      %v2206 = vtanh.pop %v2174
      %v2207 = vtanh.pop %v2175
      %v2208 = vtanh.pop %v2176
      %v2209 = vtanh.pop %v2177
      %v2210 = vtanh.pop %v2178
      %v2211 = vtanh.pop %v2179
      %v2212 = vtanh.pop %v2180
      %v2213 = vtanh.pop %v2181
      %v2214 = vtanh.pop %v2182
      %v2215 = vtanh.pop %v2183
      %v2216 = vtanh.pop %v2184
      %v2217 = vtanh.pop %v2185
      %v2218 = vtanh.pop %v2186
      %v2219 = vtanh.pop %v2187
      %v2220 = vtanh.pop %v2188
      %v2221 = vtanh.pop %v2189
      %v2222 = vtanh.pop %v2190
      %v2223 = vtanh.pop %v2191
      %v2224 = vtanh.pop %v2192
      %v2225 = vtanh.pop %v2193
      %v2226 = vtanh.pop %v2194
      %v2227 = vtanh.pop %v2195
      %v2228 = vtanh.pop %v2196
      %v2229 = vtanh.pop %v2197
      %v2230 = vtanh.pop %v2198
      %v2231 = vtanh.pop %v2199
      %v2232 = vtanh.pop %v2200
      %v2233 = vtanh.pop %v2201
      %v2234 = vtanh.pop %v2202
      %v2235 = vtanh.pop %v2203
      %v2236 = vtanh.pop %v2204
      %v2237 = vtanh.pop %v2205
      %v2238 = vtanh.pop %v2206
      %v2239 = vtanh.pop %v2207
      %v2240 = vtanh.pop %v2208
      %v2241 = vtanh.pop %v2209
      %v2242 = vtanh.pop %v2210
      %v2243 = vtanh.pop %v2211
      %v2244 = vtanh.pop %v2212
      %v2245 = vtanh.pop %v2213
      %v2246 = vtanh.pop %v2214
      %v2247 = vtanh.pop %v2215
      %v2248 = vtanh.pop %v2216
      %v2249 = vtanh.pop %v2217
      %v2250 = vtanh.pop %v2218
      %v2251 = vld [vmem:[%s3] sm:$0xff]
      %v2252 = vld [vmem:[%s3 + $0x8] sm:$0xff]
      %v2253 = vld [vmem:[%s3 + $0x10] sm:$0xff]
      %v2254 = vld [vmem:[%s3 + $0x18] sm:$0xff]
      %v2255 = vld [vmem:[%s3 + $0x20] sm:$0xff]
      %v2256 = vld [vmem:[%s3 + $0x28] sm:$0xff]
      %v2257 = vld [vmem:[%s3 + $0x30] sm:$0xff]
      %v2258 = vld [vmem:[%s3 + $0x38] sm:$0xff]
      %v2259 = vld [vmem:[%s3 + $0x40] sm:$0xff]
      %v2260 = vld [vmem:[%s3 + $0x48] sm:$0xff]
      %v2261 = vld [vmem:[%s3 + $0x50] sm:$0xff]
      %v2262 = vld [vmem:[%s3 + $0x58] sm:$0xff]
      %v2263 = vld [vmem:[%s3 + $0x60] sm:$0xff]
      %v2264 = vld [vmem:[%s3 + $0x68] sm:$0xff]
      %v2265 = vld [vmem:[%s3 + $0x70] sm:$0xff]
      %v2266 = vld [vmem:[%s3 + $0x78] sm:$0xff]
      %v2267 = vld [vmem:[%s4] sm:$0x1]
      %v2269 = vlaneseq
      %v2270 = vshrl.u32 %v2269, 7
      %v2271 = vsub.s32 0, %v2270
      %v2272 = vrot.slane %v2267, %v2271
      %v2306 = vrot.slane %v2220, 7
      %vm2307 = vcmask 1041409
      %v2308 = vsel %vm2307, %v2306, %v2219
      %v2309 = vrot.slane %v2221, 6
      %vm2310 = vcmask 1042434
      %v2311 = vsel %vm2310, %v2309, %v2308
      %v2312 = vrot.slane %v2222, 5
      %vm2313 = vcmask 1043459
      %v2314 = vsel %vm2313, %v2312, %v2311
      %v2315 = vrot.slane %v2223, 4
      %vm2316 = vcmask 1044484
      %v2317 = vsel %vm2316, %v2315, %v2314
      %v2318 = vrot.slane %v2224, 3
      %vm2319 = vcmask 1045509
      %v2320 = vsel %vm2319, %v2318, %v2317
      %v2321 = vrot.slane %v2225, 2
      %vm2322 = vcmask 1046534
      %v2323 = vsel %vm2322, %v2321, %v2320
      %v2324 = vrot.slane %v2226, 1
      %vm2325 = vcmask 1047559
      %v2326 = vsel %vm2325, %v2324, %v2323
      %v2327 = vrot.slane %v2228, 7
      %v2328 = vsel %vm2307, %v2327, %v2227
      %v2329 = vrot.slane %v2229, 6
      %v2330 = vsel %vm2310, %v2329, %v2328
      %v2331 = vrot.slane %v2230, 5
      %v2332 = vsel %vm2313, %v2331, %v2330
      %v2333 = vrot.slane %v2231, 4
      %v2334 = vsel %vm2316, %v2333, %v2332
      %v2335 = vrot.slane %v2232, 3
      %v2336 = vsel %vm2319, %v2335, %v2334
      %v2337 = vrot.slane %v2233, 2
      %v2338 = vsel %vm2322, %v2337, %v2336
      %v2339 = vrot.slane %v2234, 1
      %v2340 = vsel %vm2325, %v2339, %v2338
      %v2341 = vrot.slane %v2236, 7
      %v2342 = vsel %vm2307, %v2341, %v2235
      %v2343 = vrot.slane %v2237, 6
      %v2344 = vsel %vm2310, %v2343, %v2342
      %v2345 = vrot.slane %v2238, 5
      %v2346 = vsel %vm2313, %v2345, %v2344
      %v2347 = vrot.slane %v2239, 4
      %v2348 = vsel %vm2316, %v2347, %v2346
      %v2349 = vrot.slane %v2240, 3
      %v2350 = vsel %vm2319, %v2349, %v2348
      %v2351 = vrot.slane %v2241, 2
      %v2352 = vsel %vm2322, %v2351, %v2350
      %v2353 = vrot.slane %v2242, 1
      %v2354 = vsel %vm2325, %v2353, %v2352
      %v2355 = vrot.slane %v2244, 7
      %v2356 = vsel %vm2307, %v2355, %v2243
      %v2357 = vrot.slane %v2245, 6
      %v2358 = vsel %vm2310, %v2357, %v2356
      %v2359 = vrot.slane %v2246, 5
      %v2360 = vsel %vm2313, %v2359, %v2358
      %v2361 = vrot.slane %v2247, 4
      %v2362 = vsel %vm2316, %v2361, %v2360
      %v2363 = vrot.slane %v2248, 3
      %v2364 = vsel %vm2319, %v2363, %v2362
      %v2365 = vrot.slane %v2249, 2
      %v2366 = vsel %vm2322, %v2365, %v2364
      %v2367 = vrot.slane %v2250, 1
      %v2368 = vsel %vm2325, %v2367, %v2366
      %2373 = vmatprep.subr.mxu0 0.0
      %2374 = vmatpush1.msra.mxu0 %v2251
      %2375 = vmatprep.subr.mxu0 0.0
      %2376 = vmatpush1.msra.mxu0 %v2252
      %2377 = vmatprep.subr.mxu0 0.0
      %2378 = vmatpush1.msra.mxu0 %v2253
      %2379 = vmatprep.subr.mxu0 0.0
      %2380 = vmatpush1.msra.mxu0 %v2254
      %2381 = vmatprep.subr.mxu0 0.0
      %2382 = vmatpush1.msra.mxu0 %v2255
      %2383 = vmatprep.subr.mxu0 0.0
      %2384 = vmatpush1.msra.mxu0 %v2256
      %2385 = vmatprep.subr.mxu0 0.0
      %2386 = vmatpush1.msra.mxu0 %v2257
      %2387 = vmatprep.subr.mxu0 0.0
      %2388 = vmatpush1.msra.mxu0 %v2258
      %2389 = vmatprep.subr.mxu0 0.0
      %2390 = vmatpush1.msra.mxu0 %v2259
      %2391 = vmatprep.subr.mxu0 0.0
      %2392 = vmatpush1.msra.mxu0 %v2260
      %2393 = vmatprep.subr.mxu0 0.0
      %2394 = vmatpush1.msra.mxu0 %v2261
      %2395 = vmatprep.subr.mxu0 0.0
      %2396 = vmatpush1.msra.mxu0 %v2262
      %2397 = vmatprep.subr.mxu0 0.0
      %2398 = vmatpush1.msra.mxu0 %v2263
      %2399 = vmatprep.subr.mxu0 0.0
      %2400 = vmatpush1.msra.mxu0 %v2264
      %2401 = vmatprep.subr.mxu0 0.0
      %2402 = vmatpush1.msra.mxu0 %v2265
      %2403 = vmatprep.subr.mxu0 0.0
      %2404 = vmatpush1.msra.mxu0 %v2266
      %2405 = vmatprep.subr.mxu0 0.0
      %2406 = vmatpush1.msra.mxu0 0.0
      %2407 = vmatprep.subr.mxu0 0.0
      %2408 = vmatpush1.msra.mxu0 0.0
      %2409 = vmatprep.subr.mxu0 0.0
      %2410 = vmatpush1.msra.mxu0 0.0
      %2411 = vmatprep.subr.mxu0 0.0
      %2412 = vmatpush1.msra.mxu0 0.0
      %2413 = vmatprep.subr.mxu0 0.0
      %2414 = vmatpush1.msra.mxu0 0.0
      %2415 = vmatprep.subr.mxu0 0.0
      %2416 = vmatpush1.msra.mxu0 0.0
      %2417 = vmatprep.subr.mxu0 0.0
      %2418 = vmatpush1.msra.mxu0 0.0
      %2419 = vmatprep.subr.mxu0 0.0
      %2420 = vmatpush1.msra.mxu0 0.0
      %2421 = vmatprep.subr.mxu0 0.0
      %2422 = vmatpush1.msra.mxu0 0.0
      %2423 = vmatprep.subr.mxu0 0.0
      %2424 = vmatpush1.msra.mxu0 0.0
      %2425 = vmatprep.subr.mxu0 0.0
      %2426 = vmatpush1.msra.mxu0 0.0
      %2427 = vmatprep.subr.mxu0 0.0
      %2428 = vmatpush1.msra.mxu0 0.0
      %2429 = vmatprep.subr.mxu0 0.0
      %2430 = vmatpush1.msra.mxu0 0.0
      %2431 = vmatprep.subr.mxu0 0.0
      %2432 = vmatpush1.msra.mxu0 0.0
      %2433 = vmatprep.subr.mxu0 0.0
      %2434 = vmatpush1.msra.mxu0 0.0
      %2435 = vmatprep.subr.mxu0 0.0
      %2436 = vmatpush1.msra.mxu0 0.0
      %2437 = vmatprep.mubr.f32.mxu0 0.0
      %2438 = vmatmul.mubr.f32.gmra.mrb[0].mxu0 %v2326
      %v2439 = vpop.f32.mrb[0].mxu0
      %v2440 = vadd.f32 %v2272, %v2439
      %v2441 = vpop.f32.mrb[0].mxu0
      %2442 = vmatprep.mubr.f32.mxu0 0.0
      %2443 = vmatmul.mubr.f32.gmra.mrb[0].mxu0 %v2340
      %v2444 = vpop.f32.mrb[0].mxu0
      %v2445 = vadd.f32 %v2272, %v2444
      %v2446 = vpop.f32.mrb[0].mxu0
      %2447 = vmatprep.mubr.f32.mxu0 0.0
      %2448 = vmatmul.mubr.f32.gmra.mrb[0].mxu0 %v2354
      %v2449 = vpop.f32.mrb[0].mxu0
      %v2450 = vadd.f32 %v2272, %v2449
      %v2451 = vpop.f32.mrb[0].mxu0
      %2452 = vmatprep.mubr.f32.mxu0 0.0
      %2453 = vmatmul.mubr.f32.gmra.mrb[0].mxu0 %v2368
      %v2454 = vpop.f32.mrb[0].mxu0
      %v2455 = vadd.f32 %v2272, %v2454
      %v2456 = vpop.f32.mrb[0].mxu0
      %2457 = vdwg.mxu0
      %2458 = vst.msk [vmem:[%s229] sm:$0xff] %vm359, %v2440
      %2459 = vst.msk [vmem:[%s229 + $0x8] sm:$0xff] %vm359, %v2445
      %2460 = vst.msk [vmem:[%s229 + $0x10] sm:$0xff] %vm359, %v2450
      %2461 = vst.msk [vmem:[%s229 + $0x18] sm:$0xff] %vm359, %v2455
      %s2462 = smul.u32 4, %s16
      %p2463 = scmp.lt.s32.totalorder %s2462, 7
      %s2464 = scalar_select %p2463, %s2462, 7
      %s2465 = smul.addr %s2464, 8
      %s2466 = scalar_lea.vmem %s5, %s2465
      // Predicated region
      $region41: #{tpu_custom_call.1} parent=39 // pred_check
        %p2467 = pneg %p144
      $region42: #{tpu_custom_call.1} parent=39 // pred_check_branch
        %2469 = sbr.rel (%p2467) target = $region44
      $region43: #{tpu_custom_call.1} parent=39 // pred_region
        %s2470 = smul.u32 4, %s16
      $region44: #{tpu_custom_call.1} parent=39 // pred_fallthru
        _
    $region40: #{tpu_custom_call.1} parent=5 // pred_fallthru
      _
    %p2471 = scmp.le.s32.totalorder 2, %s11
    // Predicated region
    $region45: #{tpu_custom_call.1} parent=5 // pred_check
      %p2472 = pneg %p2471
    $region46: #{tpu_custom_call.1} parent=5 // pred_check_branch
      %2474 = sbr.rel (%p2472) target = $region48
    $region47: #{tpu_custom_call.1} parent=5 // pred_region
      %s2475 = ssub.s32 %s11, 2
      // Predicated region
      $region49: #{tpu_custom_call.1} parent=47 // pred_check
        %p2476 = pneg %p150
      $region50: #{tpu_custom_call.1} parent=47 // pred_check_branch
        %2478 = sbr.rel (%p2476) target = $region52
      $region51: #{tpu_custom_call.1} parent=47 // pred_region
        %s2479 = smul.u32 4, %s17
        %p2480 = scmp.lt.s32.totalorder %s2479, 7
        %s2481 = scalar_select %p2480, %s2479, 7
        %s2482 = smul.addr %s2481, 8
        %s2483 = scalar_lea.vmem %s5, %s2482
      $region52: #{tpu_custom_call.1} parent=47 // pred_fallthru
        _
    $region48: #{tpu_custom_call.1} parent=5 // pred_fallthru
      _
  $region6: #{tpu_custom_call.1} parent=0 // loop_footer
    %s15 = sadd.s32 1, %s11
  $region7: #{tpu_custom_call.1} parent=0 // loop_footer_branch
    %10 = sbr.rel target = $region3
  $region8: #{tpu_custom_call.1} parent=0 // loop_exit
    _

</llo_original>
